<compile_context>
chip_gen: v7x
topology: tpu7x:2x2x1
jax: 0.10.0
libtpu: 0.0.40
codegen_flags: <defaults>
</compile_context>

<pallas_src>
import jax
import jax.numpy as jnp
from jax.experimental import pallas as pl
from jax.experimental.pallas import tpu as pltpu


def _auroc_pair_kernel(a_ref, b_ref, numer_ref):
    """Accumulate the per-label Mann-Whitney numerator over one (i, j) pair block.

    a_ref     : (L, Bi) f32 positive-masked predictions (-inf for non-positive /
                padded samples), samples on the lane axis.
    b_ref     : (L, Bj) f32 negative-masked predictions (+inf for non-negative /
                padded samples).
    numer_ref : (1, L, 1) f32 per-label numerator partials for this i block,
                resident across the j grid axis (accumulator).
    """
    @pl.when(pl.program_id(1) == 0)
    def _():
        numer_ref[...] = jnp.zeros_like(numer_ref)

    a = a_ref[...]                    # (L, Bi)
    b = b_ref[...]                    # (L, Bj)
    ai = a[:, :, None]                # (L, Bi, 1)
    bj = b[:, None, :]                # (L, 1, Bj)

    # 1(ai > bj) + 0.5 * 1(ai == bj)  ==  0.5 * (1(ai > bj) + 1(ai >= bj)).
    # Because non-positive i samples carry -inf and non-negative j samples carry
    # +inf, every invalid pair yields 0 for both comparisons -- no weights needed.
    pair = (ai > bj).astype(jnp.float32) + (ai >= bj).astype(jnp.float32)  # (L,Bi,Bj)

    s = jnp.sum(pair, axis=2)                              # (L, Bi)  lane reduce
    contrib = 0.5 * jnp.sum(s, axis=1, keepdims=True)      # (L, 1)   sublane reduce
    numer_ref[...] += contrib[None, :, :]                  # (1, L, 1)


def _pick_block(num_labels: int, n_samples: int) -> int:
    """Largest lane-dense pair block whose (L, B, B) f32 intermediate <= ~4 MiB."""
    budget = 4 * 1024 * 1024
    block = 128
    for cand in (256, 512):
        if num_labels * cand * cand * 4 <= budget:
            block = cand
    # No point in a block larger than the (128-padded) sample count.
    block = min(block, ((n_samples + 127) // 128) * 128)
    return block


def multilabel_auroc(preds: jax.Array, target: jax.Array) -> jax.Array:
    """preds: (N, L) float scores; target: (N, L) int/bool labels. Returns f32 scalar."""
    n, num_labels = preds.shape
    assert target.shape == (n, num_labels)

    block = _pick_block(num_labels, n)
    n_blocks = pl.cdiv(n, block)
    n_pad = n_blocks * block

    p = preds.astype(jnp.float32)
    t = target.astype(jnp.int32)
    pos = (t == 1)
    neg = (t == 0)

    # (L, N) layout: samples on the lane (last, 128-wide) axis.  Fold class
    # membership + padding into the prediction values so the kernel is weight-free.
    a = jnp.where(pos, p, -jnp.inf).T                                   # i operand
    b = jnp.where(neg, p, jnp.inf).T                                    # j operand
    a = jnp.pad(a, ((0, 0), (0, n_pad - n)), constant_values=-jnp.inf)
    b = jnp.pad(b, ((0, 0), (0, n_pad - n)), constant_values=jnp.inf)

    numer_partials = pl.pallas_call(
        _auroc_pair_kernel,
        out_shape=jax.ShapeDtypeStruct((n_blocks, num_labels, 1), jnp.float32),
        grid_spec=pltpu.PrefetchScalarGridSpec(
            num_scalar_prefetch=0,
            grid=(n_blocks, n_blocks),
            in_specs=[
                pl.BlockSpec((num_labels, block), lambda i, j: (0, i)),  # pos-masked, i tile
                pl.BlockSpec((num_labels, block), lambda i, j: (0, j)),  # neg-masked, j tile
            ],
            out_specs=pl.BlockSpec((1, num_labels, 1), lambda i, j: (i, 0, 0)),
        ),
        compiler_params=pltpu.CompilerParams(
            dimension_semantics=("parallel", "arbitrary"),
        ),
    )(a, b)

    # Tiny O(N*L) finalization in the wrapper (per-i-block partials reduced here
    # so the i grid axis can stay "parallel").
    numer = jnp.sum(numer_partials[:, :, 0], axis=0)                   # (L,)
    n_pos = jnp.sum(pos.astype(jnp.float32), axis=0)                   # (L,)
    n_neg = jnp.sum(neg.astype(jnp.float32), axis=0)                   # (L,)
    denom = n_pos * n_neg
    valid = denom > 0.0
    per_label = jnp.where(valid, numer / jnp.where(valid, denom, 1.0), 0.0)
    n_valid = jnp.sum(valid.astype(jnp.float32))
    # Guard: if no label has both classes, return NaN (degenerate case) instead of Inf.
    return jnp.where(n_valid > 0.0,
                     jnp.sum(per_label) / jnp.maximum(n_valid, 1.0),
                     jnp.float32(jnp.nan))


def _auroc_reference(preds, target):
    """Pure-JAX reference (same Mann-Whitney formulation) for verification."""
    p = preds.astype(jnp.float32)
    t = target.astype(jnp.float32)
    pos = t
    neg = 1.0 - t
    gt = (p[:, None, :] > p[None, :, :]).astype(jnp.float32)
    eq = (p[:, None, :] == p[None, :, :]).astype(jnp.float32)
    w = pos[:, None, :] * neg[None, :, :]
    numer = jnp.sum(w * (gt + 0.5 * eq), axis=(0, 1))
    denom = jnp.sum(pos, axis=0) * jnp.sum(neg, axis=0)
    valid = denom > 0
    per_label = jnp.where(valid, numer / jnp.where(valid, denom, 1.0), 0.0)
    return jnp.sum(per_label) / jnp.sum(valid.astype(jnp.float32))


if __name__ == "__main__":
    # TODO(synk): torchmetrics' stateful update/compute/reset accumulation across
    # batches is not modeled; forward() on a single batch is what is implemented.

    # ---- test 1: toy shape matching the module spec (num_labels=8), with ties --
    num_labels = 8
    n_samples = 16
    key = jax.random.PRNGKey(0)
    k_preds, k_tgt, k_preds2, k_tgt2 = jax.random.split(key, 4)

    preds = jax.random.uniform(k_preds, (n_samples, num_labels), dtype=jnp.float32)
    preds = jnp.round(preds * 4.0) / 4.0   # quantize -> guaranteed ties (0.5 path)
    target = jax.random.bernoulli(k_tgt, p=0.5, shape=(n_samples, num_labels)).astype(jnp.int32)
    # Guarantee every label has at least one positive and one negative.
    target = target.at[0, :].set(1)
    target = target.at[1, :].set(0)

    result = jax.block_until_ready(multilabel_auroc(preds, target))
    ref = jax.block_until_ready(_auroc_reference(preds, target))
    assert abs(float(result) - float(ref)) < 1e-5, (float(result), float(ref))

    # ---- test 2: multi-block grid + padding + a single-class (skipped) label ---
    n2 = 300
    preds2 = jax.random.uniform(k_preds2, (n2, num_labels), dtype=jnp.float32)
    target2 = jax.random.bernoulli(k_tgt2, p=0.3, shape=(n2, num_labels)).astype(jnp.int32)
    target2 = target2.at[:, 3].set(1)   # label 3 has only positives -> excluded from macro avg
    result2 = jax.block_until_ready(multilabel_auroc(preds2, target2))
    ref2 = jax.block_until_ready(_auroc_reference(preds2, target2))
    assert abs(float(result2) - float(ref2)) < 1e-5, (float(result2), float(ref2))

    print("KERNEL_OK")
</pallas_src>

<mosaic_0001>
module attributes {stable_mosaic.version = 11 : i64} {
  func.func @_auroc_pair_kernel(%arg0: i32, %arg1: i32, %arg2: memref<8x128xf32, #tpu.memory_space<vmem>>, %arg3: memref<8x128xf32, #tpu.memory_space<vmem>>, %arg4: memref<1x8x1xf32, #tpu.memory_space<vmem>>) attributes {dimension_semantics = [#tpu.dimension_semantics<parallel>, #tpu.dimension_semantics<arbitrary>], iteration_bounds = array<i64: 1, 1>, scalar_prefetch = 0 : i64, scratch_operands = 0 : i64, tpu.core_type = #tpu.core_type<tc>, window_params = [{transform_indices = @transform_0, window_bounds = array<i64: 8, 128>}, {transform_indices = @transform_1, window_bounds = array<i64: 8, 128>}, {transform_indices = @transform_2, window_bounds = array<i64: 1, 8, 1>}]} {
    %c0_i32 = arith.constant 0 : i32
    %0 = arith.cmpi eq, %arg1, %c0_i32 : i32
    %1 = arith.extui %0 : i1 to i32
    %c0_i32_0 = arith.constant 0 : i32
    %2 = arith.cmpi ne, %1, %c0_i32_0 : i32
    scf.if %2 {
      %cst_12 = arith.constant 0.000000e+00 : f32
      %27 = vector.broadcast %cst_12 : f32 to vector<1x8x1xf32>
      %c0_13 = arith.constant 0 : index
      %c0_14 = arith.constant 0 : index
      %c0_15 = arith.constant 0 : index
      %28 = vector.load %arg4[%c0_13, %c0_14, %c0_15] : memref<1x8x1xf32, #tpu.memory_space<vmem>>, vector<1x8x1xf32>
      tpu.vector_store %arg4[%c0_13, %c0_14, %c0_15], %27 {strides = array<i32>} : memref<1x8x1xf32, #tpu.memory_space<vmem>>, vector<1x8x1xf32>,
    } else {
    }
    %c0 = arith.constant 0 : index
    %c0_1 = arith.constant 0 : index
    %3 = vector.load %arg2[%c0, %c0_1] : memref<8x128xf32, #tpu.memory_space<vmem>>, vector<8x128xf32>
    %c0_2 = arith.constant 0 : index
    %c0_3 = arith.constant 0 : index
    %4 = vector.load %arg3[%c0_2, %c0_3] : memref<8x128xf32, #tpu.memory_space<vmem>>, vector<8x128xf32>
    %5 = vector.shape_cast %3 : vector<8x128xf32> to vector<8x128x1xf32>
    %6 = vector.shape_cast %4 : vector<8x128xf32> to vector<8x1x128xf32>
    %7 = vector.broadcast %5 : vector<8x128x1xf32> to vector<8x128x128xf32>
    %8 = vector.broadcast %6 : vector<8x1x128xf32> to vector<8x128x128xf32>
    %9 = arith.cmpf ogt, %7, %8 : vector<8x128x128xf32>
    %10 = arith.extui %9 : vector<8x128x128xi1> to vector<8x128x128xi32>
    %11 = arith.sitofp %10 : vector<8x128x128xi32> to vector<8x128x128xf32>
    %12 = vector.broadcast %5 : vector<8x128x1xf32> to vector<8x128x128xf32>
    %13 = vector.broadcast %6 : vector<8x1x128xf32> to vector<8x128x128xf32>
    %14 = arith.cmpf oge, %12, %13 : vector<8x128x128xf32>
    %15 = arith.extui %14 : vector<8x128x128xi1> to vector<8x128x128xi32>
    %16 = arith.sitofp %15 : vector<8x128x128xi32> to vector<8x128x128xf32>
    %17 = arith.addf %11, %16 : vector<8x128x128xf32>
    %cst = arith.constant dense<0.000000e+00> : vector<8x128xf32>
    %18 = vector.multi_reduction <add>, %17, %cst [2] : vector<8x128x128xf32> to vector<8x128xf32>
    %cst_4 = arith.constant dense<0.000000e+00> : vector<8xf32>
    %19 = vector.multi_reduction <add>, %18, %cst_4 [1] : vector<8x128xf32> to vector<8xf32>
    %20 = vector.shape_cast %19 : vector<8xf32> to vector<8x1xf32>
    %cst_5 = arith.constant 5.000000e-01 : f32
    %21 = vector.broadcast %cst_5 : f32 to vector<8x1xf32>
    %22 = arith.mulf %21, %20 : vector<8x1xf32>
    %c0_6 = arith.constant 0 : index
    %c0_7 = arith.constant 0 : index
    %c0_8 = arith.constant 0 : index
    %23 = vector.load %arg4[%c0_6, %c0_7, %c0_8] : memref<1x8x1xf32, #tpu.memory_space<vmem>>, vector<1x8x1xf32>
    %24 = vector.shape_cast %22 : vector<8x1xf32> to vector<1x8x1xf32>
    %25 = arith.addf %23, %24 : vector<1x8x1xf32>
    %c0_9 = arith.constant 0 : index
    %c0_10 = arith.constant 0 : index
    %c0_11 = arith.constant 0 : index
    %26 = vector.load %arg4[%c0_9, %c0_10, %c0_11] : memref<1x8x1xf32, #tpu.memory_space<vmem>>, vector<1x8x1xf32>
    tpu.vector_store %arg4[%c0_9, %c0_10, %c0_11], %25 {strides = array<i32>} : memref<1x8x1xf32, #tpu.memory_space<vmem>>, vector<1x8x1xf32>,
    return
  }
  func.func @transform_0(%arg0: i32, %arg1: i32) -> (i32, i32) {
    %c0_i32 = arith.constant 0 : i32
    %c0_i32_0 = arith.constant 0 : i32
    return %c0_i32, %arg0 : i32, i32
  }
  func.func @transform_1(%arg0: i32, %arg1: i32) -> (i32, i32) {
    %c0_i32 = arith.constant 0 : i32
    %c0_i32_0 = arith.constant 0 : i32
    return %c0_i32, %arg1 : i32, i32
  }
  func.func @transform_2(%arg0: i32, %arg1: i32) -> (i32, i32, i32) {
    %c0_i32 = arith.constant 0 : i32
    %c0_i32_0 = arith.constant 0 : i32
    %c0_i32_1 = arith.constant 0 : i32
    return %arg0, %c0_i32, %c0_i32_0 : i32, i32, i32
  }
}

</mosaic_0001>

<llo_original>
// kernel: tpu_custom_call.1
$region0: #{tpu_custom_call.1}
  #allocation0 [shape = 'u32[]', space=smem, size = 0x4, offset = 0x4, fixed_abs, tag = 'smem constant byte address 0x4 - core index']
  #allocation1 [shape = 'u32[144,128]{1,0:T(1,128)}', space=vmem, size = 0x12000, scoped, tag = 'internal scratch']
  %s0 = inlined_call_operand.hbm [shape: f32[8,128], index: 0, kind: input, shape index: {}]
  %s1 = inlined_call_operand.hbm [shape: f32[8,128], index: 1, kind: input, shape index: {}]
  %s2 = inlined_call_operand.vmem [shape: f32[1,8,1], index: 2, kind: output, shape index: {}]
  %s3 = sld [smem:[#allocation0]]
  $region30: #{tpu_custom_call.1} parent=0
    _
  %s5 = ssub.s32 1, %s3
  %s6 = scalar_select 0, %s5, %s3
  $region1: #{tpu_custom_call.1} parent=0
    #allocation2 [shape = 'u8[4096]{0}', space=vmem, size = 0x1000, scoped, tag = 'input window, operand 0, single buffered']
    #allocation3 [shape = 's32[1]{0}', space=sflag, size = 0x4, scoped, tag = 'scoped memory for tpu_custom_call.1']
    #allocation4 [shape = 'u8[4096]{0}', space=vmem, size = 0x1000, scoped, tag = 'input window, operand 1, single buffered']
    #allocation5 [shape = 's32[1]{0}', space=sflag, size = 0x4, scoped, tag = 'scoped memory for tpu_custom_call.1']
    %7 = vsyncpa [#allocation3], 0
    %8 = vsyncpa [#allocation5], 0
    // Predicated region
    $region2: #{tpu_custom_call.1} parent=1 // pred_check
      _
    $region3: #{tpu_custom_call.1} parent=1 // pred_check_branch
      %10 = sbr.rel (0) target = $region5
    $region4: #{tpu_custom_call.1} parent=1 // pred_region
      %s12 = ssub.s32 128, 128
      %13 = vsyncadd [#allocation3], %s12
      %s15 = sshll.u32 [#allocation2], 4
      %s16 = int_to_ptr.vmem [resolvable:$true] %s15
      %18 = dma.hbm_to_vmem [thread:$0]  %s0, 128, %s16, [#allocation3]
    $region5: #{tpu_custom_call.1} parent=1 // pred_fallthru
      _
    // Predicated region
    $region6: #{tpu_custom_call.1} parent=1 // pred_check
      _
    $region7: #{tpu_custom_call.1} parent=1 // pred_check_branch
      %20 = sbr.rel (0) target = $region9
    $region8: #{tpu_custom_call.1} parent=1 // pred_region
      %s22 = ssub.s32 128, 128
      %23 = vsyncadd [#allocation5], %s22
      %s25 = sshll.u32 [#allocation4], 4
      %s26 = int_to_ptr.vmem [resolvable:$true] %s25
      %28 = dma.hbm_to_vmem [thread:$0]  %s1, 128, %s26, [#allocation5]
    $region9: #{tpu_custom_call.1} parent=1 // pred_fallthru
      _
    // Predicated region
    $region10: #{tpu_custom_call.1} parent=1 // pred_check
      _
    $region11: #{tpu_custom_call.1} parent=1 // pred_check_branch
      %30 = sbr.rel (0) target = $region13
    $region12: #{tpu_custom_call.1} parent=1 // pred_region
      %31 = dma.done [#allocation3], 128
    $region13: #{tpu_custom_call.1} parent=1 // pred_fallthru
      _
    // Predicated region
    $region14: #{tpu_custom_call.1} parent=1 // pred_check
      _
    $region15: #{tpu_custom_call.1} parent=1 // pred_check_branch
      %33 = sbr.rel (0) target = $region17
    $region16: #{tpu_custom_call.1} parent=1 // pred_region
      %34 = dma.done [#allocation5], 128
    $region17: #{tpu_custom_call.1} parent=1 // pred_fallthru
      _
    %p35 = scmp.eq.s32.totalorder 0, 0
    // Predicated region
    $region18: #{tpu_custom_call.1} parent=1 // pred_check
      %p36 = pneg %p35
    $region19: #{tpu_custom_call.1} parent=1 // pred_check_branch
      %38 = sbr.rel (%p36) target = $region21
    $region20: #{tpu_custom_call.1} parent=1 // pred_region
      %vm39 = vcmask 7168
      %40 = vst.msk [vmem:[%s2] sm:$0xff] %vm39, 0.0
    $region21: #{tpu_custom_call.1} parent=1 // pred_fallthru
      _
    %v41 = vld [vmem:[#allocation2] sm:$0xff]
    %v42 = vld [vmem:[#allocation4] sm:$0xff]
    %v43 = vlaneseq
    %v44 = vshrl.u32 %v43, 7
    %v45 = vsub.s32 0, %v44
    %v46 = vrot.slane %v41, %v45
    %48 = vbcast.lane.b32.xlu0 %v46, 256
    %v49 = vpop.permute.xlu0 %48
    %s51 = sor.u32 256, 8
    %52 = vbcast.lane.b32.xlu0 %v46, %s51
    %v53 = vpop.permute.xlu0 %52
    %s55 = sor.u32 256, 16
    %56 = vbcast.lane.b32.xlu0 %v46, %s55
    %v57 = vpop.permute.xlu0 %56
    %s59 = sor.u32 256, 24
    %60 = vbcast.lane.b32.xlu0 %v46, %s59
    %v61 = vpop.permute.xlu0 %60
    %s63 = sor.u32 256, 32
    %64 = vbcast.lane.b32.xlu0 %v46, %s63
    %v65 = vpop.permute.xlu0 %64
    %s67 = sor.u32 256, 40
    %68 = vbcast.lane.b32.xlu0 %v46, %s67
    %v69 = vpop.permute.xlu0 %68
    %s71 = sor.u32 256, 48
    %72 = vbcast.lane.b32.xlu0 %v46, %s71
    %v73 = vpop.permute.xlu0 %72
    %s75 = sor.u32 256, 56
    %76 = vbcast.lane.b32.xlu0 %v46, %s75
    %v77 = vpop.permute.xlu0 %76
    %s79 = sor.u32 256, 64
    %80 = vbcast.lane.b32.xlu0 %v46, %s79
    %v81 = vpop.permute.xlu0 %80
    %s83 = sor.u32 256, 72
    %84 = vbcast.lane.b32.xlu0 %v46, %s83
    %v85 = vpop.permute.xlu0 %84
    %s87 = sor.u32 256, 80
    %88 = vbcast.lane.b32.xlu0 %v46, %s87
    %v89 = vpop.permute.xlu0 %88
    %s91 = sor.u32 256, 88
    %92 = vbcast.lane.b32.xlu0 %v46, %s91
    %v93 = vpop.permute.xlu0 %92
    %s95 = sor.u32 256, 96
    %96 = vbcast.lane.b32.xlu0 %v46, %s95
    %v97 = vpop.permute.xlu0 %96
    %s99 = sor.u32 256, 104
    %100 = vbcast.lane.b32.xlu0 %v46, %s99
    %v101 = vpop.permute.xlu0 %100
    %s103 = sor.u32 256, 112
    %104 = vbcast.lane.b32.xlu0 %v46, %s103
    %v105 = vpop.permute.xlu0 %104
    %s107 = sor.u32 256, 120
    %108 = vbcast.lane.b32.xlu0 %v46, %s107
    %v109 = vpop.permute.xlu0 %108
    %v110 = vlaneseq
    %v111 = vshrl.u32 %v110, 7
    %v112 = vsub.s32 1, %v111
    %v113 = vrot.slane %v41, %v112
    %115 = vbcast.lane.b32.xlu0 %v113, 256
    %v116 = vpop.permute.xlu0 %115
    %s118 = sor.u32 256, 8
    %119 = vbcast.lane.b32.xlu0 %v113, %s118
    %v120 = vpop.permute.xlu0 %119
    %s122 = sor.u32 256, 16
    %123 = vbcast.lane.b32.xlu0 %v113, %s122
    %v124 = vpop.permute.xlu0 %123
    %s126 = sor.u32 256, 24
    %127 = vbcast.lane.b32.xlu0 %v113, %s126
    %v128 = vpop.permute.xlu0 %127
    %s130 = sor.u32 256, 32
    %131 = vbcast.lane.b32.xlu0 %v113, %s130
    %v132 = vpop.permute.xlu0 %131
    %s134 = sor.u32 256, 40
    %135 = vbcast.lane.b32.xlu0 %v113, %s134
    %v136 = vpop.permute.xlu0 %135
    %s138 = sor.u32 256, 48
    %139 = vbcast.lane.b32.xlu0 %v113, %s138
    %v140 = vpop.permute.xlu0 %139
    %s142 = sor.u32 256, 56
    %143 = vbcast.lane.b32.xlu0 %v113, %s142
    %v144 = vpop.permute.xlu0 %143
    %s146 = sor.u32 256, 64
    %147 = vbcast.lane.b32.xlu0 %v113, %s146
    %v148 = vpop.permute.xlu0 %147
    %s150 = sor.u32 256, 72
    %151 = vbcast.lane.b32.xlu0 %v113, %s150
    %v152 = vpop.permute.xlu0 %151
    %s154 = sor.u32 256, 80
    %155 = vbcast.lane.b32.xlu0 %v113, %s154
    %v156 = vpop.permute.xlu0 %155
    %s158 = sor.u32 256, 88
    %159 = vbcast.lane.b32.xlu0 %v113, %s158
    %v160 = vpop.permute.xlu0 %159
    %s162 = sor.u32 256, 96
    %163 = vbcast.lane.b32.xlu0 %v113, %s162
    %v164 = vpop.permute.xlu0 %163
    %s166 = sor.u32 256, 104
    %167 = vbcast.lane.b32.xlu0 %v113, %s166
    %v168 = vpop.permute.xlu0 %167
    %s170 = sor.u32 256, 112
    %171 = vbcast.lane.b32.xlu0 %v113, %s170
    %v172 = vpop.permute.xlu0 %171
    %s174 = sor.u32 256, 120
    %175 = vbcast.lane.b32.xlu0 %v113, %s174
    %v176 = vpop.permute.xlu0 %175
    %v177 = vlaneseq
    %v178 = vshrl.u32 %v177, 7
    %v179 = vsub.s32 2, %v178
    %v180 = vrot.slane %v41, %v179
    %182 = vbcast.lane.b32.xlu0 %v180, 256
    %v183 = vpop.permute.xlu0 %182
    %s185 = sor.u32 256, 8
    %186 = vbcast.lane.b32.xlu0 %v180, %s185
    %v187 = vpop.permute.xlu0 %186
    %s189 = sor.u32 256, 16
    %190 = vbcast.lane.b32.xlu0 %v180, %s189
    %v191 = vpop.permute.xlu0 %190
    %s193 = sor.u32 256, 24
    %194 = vbcast.lane.b32.xlu0 %v180, %s193
    %v195 = vpop.permute.xlu0 %194
    %s197 = sor.u32 256, 32
    %198 = vbcast.lane.b32.xlu0 %v180, %s197
    %v199 = vpop.permute.xlu0 %198
    %s201 = sor.u32 256, 40
    %202 = vbcast.lane.b32.xlu0 %v180, %s201
    %v203 = vpop.permute.xlu0 %202
    %s205 = sor.u32 256, 48
    %206 = vbcast.lane.b32.xlu0 %v180, %s205
    %v207 = vpop.permute.xlu0 %206
    %s209 = sor.u32 256, 56
    %210 = vbcast.lane.b32.xlu0 %v180, %s209
    %v211 = vpop.permute.xlu0 %210
    %s213 = sor.u32 256, 64
    %214 = vbcast.lane.b32.xlu0 %v180, %s213
    %v215 = vpop.permute.xlu0 %214
    %s217 = sor.u32 256, 72
    %218 = vbcast.lane.b32.xlu0 %v180, %s217
    %v219 = vpop.permute.xlu0 %218
    %s221 = sor.u32 256, 80
    %222 = vbcast.lane.b32.xlu0 %v180, %s221
    %v223 = vpop.permute.xlu0 %222
    %s225 = sor.u32 256, 88
    %226 = vbcast.lane.b32.xlu0 %v180, %s225
    %v227 = vpop.permute.xlu0 %226
    %s229 = sor.u32 256, 96
    %230 = vbcast.lane.b32.xlu0 %v180, %s229
    %v231 = vpop.permute.xlu0 %230
    %s233 = sor.u32 256, 104
    %234 = vbcast.lane.b32.xlu0 %v180, %s233
    %v235 = vpop.permute.xlu0 %234
    %s237 = sor.u32 256, 112
    %238 = vbcast.lane.b32.xlu0 %v180, %s237
    %v239 = vpop.permute.xlu0 %238
    %s241 = sor.u32 256, 120
    %242 = vbcast.lane.b32.xlu0 %v180, %s241
    %v243 = vpop.permute.xlu0 %242
    %v244 = vlaneseq
    %v245 = vshrl.u32 %v244, 7
    %v246 = vsub.s32 3, %v245
    %v247 = vrot.slane %v41, %v246
    %249 = vbcast.lane.b32.xlu0 %v247, 256
    %v250 = vpop.permute.xlu0 %249
    %s252 = sor.u32 256, 8
    %253 = vbcast.lane.b32.xlu0 %v247, %s252
    %v254 = vpop.permute.xlu0 %253
    %s256 = sor.u32 256, 16
    %257 = vbcast.lane.b32.xlu0 %v247, %s256
    %v258 = vpop.permute.xlu0 %257
    %s260 = sor.u32 256, 24
    %261 = vbcast.lane.b32.xlu0 %v247, %s260
    %v262 = vpop.permute.xlu0 %261
    %s264 = sor.u32 256, 32
    %265 = vbcast.lane.b32.xlu0 %v247, %s264
    %v266 = vpop.permute.xlu0 %265
    %s268 = sor.u32 256, 40
    %269 = vbcast.lane.b32.xlu0 %v247, %s268
    %v270 = vpop.permute.xlu0 %269
    %s272 = sor.u32 256, 48
    %273 = vbcast.lane.b32.xlu0 %v247, %s272
    %v274 = vpop.permute.xlu0 %273
    %s276 = sor.u32 256, 56
    %277 = vbcast.lane.b32.xlu0 %v247, %s276
    %v278 = vpop.permute.xlu0 %277
    %s280 = sor.u32 256, 64
    %281 = vbcast.lane.b32.xlu0 %v247, %s280
    %v282 = vpop.permute.xlu0 %281
    %s284 = sor.u32 256, 72
    %285 = vbcast.lane.b32.xlu0 %v247, %s284
    %v286 = vpop.permute.xlu0 %285
    %s288 = sor.u32 256, 80
    %289 = vbcast.lane.b32.xlu0 %v247, %s288
    %v290 = vpop.permute.xlu0 %289
    %s292 = sor.u32 256, 88
    %293 = vbcast.lane.b32.xlu0 %v247, %s292
    %v294 = vpop.permute.xlu0 %293
    %s296 = sor.u32 256, 96
    %297 = vbcast.lane.b32.xlu0 %v247, %s296
    %v298 = vpop.permute.xlu0 %297
    %s300 = sor.u32 256, 104
    %301 = vbcast.lane.b32.xlu0 %v247, %s300
    %v302 = vpop.permute.xlu0 %301
    %s304 = sor.u32 256, 112
    %305 = vbcast.lane.b32.xlu0 %v247, %s304
    %v306 = vpop.permute.xlu0 %305
    %s308 = sor.u32 256, 120
    %309 = vbcast.lane.b32.xlu0 %v247, %s308
    %v310 = vpop.permute.xlu0 %309
    %v311 = vlaneseq
    %v312 = vshrl.u32 %v311, 7
    %v313 = vsub.s32 4, %v312
    %v314 = vrot.slane %v41, %v313
    %316 = vbcast.lane.b32.xlu0 %v314, 256
    %v317 = vpop.permute.xlu0 %316
    %s319 = sor.u32 256, 8
    %320 = vbcast.lane.b32.xlu0 %v314, %s319
    %v321 = vpop.permute.xlu0 %320
    %s323 = sor.u32 256, 16
    %324 = vbcast.lane.b32.xlu0 %v314, %s323
    %v325 = vpop.permute.xlu0 %324
    %s327 = sor.u32 256, 24
    %328 = vbcast.lane.b32.xlu0 %v314, %s327
    %v329 = vpop.permute.xlu0 %328
    %s331 = sor.u32 256, 32
    %332 = vbcast.lane.b32.xlu0 %v314, %s331
    %v333 = vpop.permute.xlu0 %332
    %s335 = sor.u32 256, 40
    %336 = vbcast.lane.b32.xlu0 %v314, %s335
    %v337 = vpop.permute.xlu0 %336
    %s339 = sor.u32 256, 48
    %340 = vbcast.lane.b32.xlu0 %v314, %s339
    %v341 = vpop.permute.xlu0 %340
    %s343 = sor.u32 256, 56
    %344 = vbcast.lane.b32.xlu0 %v314, %s343
    %v345 = vpop.permute.xlu0 %344
    %s347 = sor.u32 256, 64
    %348 = vbcast.lane.b32.xlu0 %v314, %s347
    %v349 = vpop.permute.xlu0 %348
    %s351 = sor.u32 256, 72
    %352 = vbcast.lane.b32.xlu0 %v314, %s351
    %v353 = vpop.permute.xlu0 %352
    %s355 = sor.u32 256, 80
    %356 = vbcast.lane.b32.xlu0 %v314, %s355
    %v357 = vpop.permute.xlu0 %356
    %s359 = sor.u32 256, 88
    %360 = vbcast.lane.b32.xlu0 %v314, %s359
    %v361 = vpop.permute.xlu0 %360
    %s363 = sor.u32 256, 96
    %364 = vbcast.lane.b32.xlu0 %v314, %s363
    %v365 = vpop.permute.xlu0 %364
    %s367 = sor.u32 256, 104
    %368 = vbcast.lane.b32.xlu0 %v314, %s367
    %v369 = vpop.permute.xlu0 %368
    %s371 = sor.u32 256, 112
    %372 = vbcast.lane.b32.xlu0 %v314, %s371
    %v373 = vpop.permute.xlu0 %372
    %s375 = sor.u32 256, 120
    %376 = vbcast.lane.b32.xlu0 %v314, %s375
    %v377 = vpop.permute.xlu0 %376
    %v378 = vlaneseq
    %v379 = vshrl.u32 %v378, 7
    %v380 = vsub.s32 5, %v379
    %v381 = vrot.slane %v41, %v380
    %383 = vbcast.lane.b32.xlu0 %v381, 256
    %v384 = vpop.permute.xlu0 %383
    %s386 = sor.u32 256, 8
    %387 = vbcast.lane.b32.xlu0 %v381, %s386
    %v388 = vpop.permute.xlu0 %387
    %s390 = sor.u32 256, 16
    %391 = vbcast.lane.b32.xlu0 %v381, %s390
    %v392 = vpop.permute.xlu0 %391
    %s394 = sor.u32 256, 24
    %395 = vbcast.lane.b32.xlu0 %v381, %s394
    %v396 = vpop.permute.xlu0 %395
    %s398 = sor.u32 256, 32
    %399 = vbcast.lane.b32.xlu0 %v381, %s398
    %v400 = vpop.permute.xlu0 %399
    %s402 = sor.u32 256, 40
    %403 = vbcast.lane.b32.xlu0 %v381, %s402
    %v404 = vpop.permute.xlu0 %403
    %s406 = sor.u32 256, 48
    %407 = vbcast.lane.b32.xlu0 %v381, %s406
    %v408 = vpop.permute.xlu0 %407
    %s410 = sor.u32 256, 56
    %411 = vbcast.lane.b32.xlu0 %v381, %s410
    %v412 = vpop.permute.xlu0 %411
    %s414 = sor.u32 256, 64
    %415 = vbcast.lane.b32.xlu0 %v381, %s414
    %v416 = vpop.permute.xlu0 %415
    %s418 = sor.u32 256, 72
    %419 = vbcast.lane.b32.xlu0 %v381, %s418
    %v420 = vpop.permute.xlu0 %419
    %s422 = sor.u32 256, 80
    %423 = vbcast.lane.b32.xlu0 %v381, %s422
    %v424 = vpop.permute.xlu0 %423
    %s426 = sor.u32 256, 88
    %427 = vbcast.lane.b32.xlu0 %v381, %s426
    %v428 = vpop.permute.xlu0 %427
    %s430 = sor.u32 256, 96
    %431 = vbcast.lane.b32.xlu0 %v381, %s430
    %v432 = vpop.permute.xlu0 %431
    %s434 = sor.u32 256, 104
    %435 = vbcast.lane.b32.xlu0 %v381, %s434
    %v436 = vpop.permute.xlu0 %435
    %s438 = sor.u32 256, 112
    %439 = vbcast.lane.b32.xlu0 %v381, %s438
    %v440 = vpop.permute.xlu0 %439
    %s442 = sor.u32 256, 120
    %443 = vbcast.lane.b32.xlu0 %v381, %s442
    %v444 = vpop.permute.xlu0 %443
    %v445 = vlaneseq
    %v446 = vshrl.u32 %v445, 7
    %v447 = vsub.s32 6, %v446
    %v448 = vrot.slane %v41, %v447
    %450 = vbcast.lane.b32.xlu0 %v448, 256
    %v451 = vpop.permute.xlu0 %450
    %s453 = sor.u32 256, 8
    %454 = vbcast.lane.b32.xlu0 %v448, %s453
    %v455 = vpop.permute.xlu0 %454
    %s457 = sor.u32 256, 16
    %458 = vbcast.lane.b32.xlu0 %v448, %s457
    %v459 = vpop.permute.xlu0 %458
    %s461 = sor.u32 256, 24
    %462 = vbcast.lane.b32.xlu0 %v448, %s461
    %v463 = vpop.permute.xlu0 %462
    %s465 = sor.u32 256, 32
    %466 = vbcast.lane.b32.xlu0 %v448, %s465
    %v467 = vpop.permute.xlu0 %466
    %s469 = sor.u32 256, 40
    %470 = vbcast.lane.b32.xlu0 %v448, %s469
    %v471 = vpop.permute.xlu0 %470
    %s473 = sor.u32 256, 48
    %474 = vbcast.lane.b32.xlu0 %v448, %s473
    %v475 = vpop.permute.xlu0 %474
    %s477 = sor.u32 256, 56
    %478 = vbcast.lane.b32.xlu0 %v448, %s477
    %v479 = vpop.permute.xlu0 %478
    %s481 = sor.u32 256, 64
    %482 = vbcast.lane.b32.xlu0 %v448, %s481
    %v483 = vpop.permute.xlu0 %482
    %s485 = sor.u32 256, 72
    %486 = vbcast.lane.b32.xlu0 %v448, %s485
    %v487 = vpop.permute.xlu0 %486
    %s489 = sor.u32 256, 80
    %490 = vbcast.lane.b32.xlu0 %v448, %s489
    %v491 = vpop.permute.xlu0 %490
    %s493 = sor.u32 256, 88
    %494 = vbcast.lane.b32.xlu0 %v448, %s493
    %v495 = vpop.permute.xlu0 %494
    %s497 = sor.u32 256, 96
    %498 = vbcast.lane.b32.xlu0 %v448, %s497
    %v499 = vpop.permute.xlu0 %498
    %s501 = sor.u32 256, 104
    %502 = vbcast.lane.b32.xlu0 %v448, %s501
    %v503 = vpop.permute.xlu0 %502
    %s505 = sor.u32 256, 112
    %506 = vbcast.lane.b32.xlu0 %v448, %s505
    %v507 = vpop.permute.xlu0 %506
    %s509 = sor.u32 256, 120
    %510 = vbcast.lane.b32.xlu0 %v448, %s509
    %v511 = vpop.permute.xlu0 %510
    %v512 = vlaneseq
    %v513 = vshrl.u32 %v512, 7
    %v514 = vsub.s32 7, %v513
    %v515 = vrot.slane %v41, %v514
    %517 = vbcast.lane.b32.xlu0 %v515, 256
    %v518 = vpop.permute.xlu0 %517
    %s520 = sor.u32 256, 8
    %521 = vbcast.lane.b32.xlu0 %v515, %s520
    %v522 = vpop.permute.xlu0 %521
    %s524 = sor.u32 256, 16
    %525 = vbcast.lane.b32.xlu0 %v515, %s524
    %v526 = vpop.permute.xlu0 %525
    %s528 = sor.u32 256, 24
    %529 = vbcast.lane.b32.xlu0 %v515, %s528
    %v530 = vpop.permute.xlu0 %529
    %s532 = sor.u32 256, 32
    %533 = vbcast.lane.b32.xlu0 %v515, %s532
    %v534 = vpop.permute.xlu0 %533
    %s536 = sor.u32 256, 40
    %537 = vbcast.lane.b32.xlu0 %v515, %s536
    %v538 = vpop.permute.xlu0 %537
    %s540 = sor.u32 256, 48
    %541 = vbcast.lane.b32.xlu0 %v515, %s540
    %v542 = vpop.permute.xlu0 %541
    %s544 = sor.u32 256, 56
    %545 = vbcast.lane.b32.xlu0 %v515, %s544
    %v546 = vpop.permute.xlu0 %545
    %s548 = sor.u32 256, 64
    %549 = vbcast.lane.b32.xlu0 %v515, %s548
    %v550 = vpop.permute.xlu0 %549
    %s552 = sor.u32 256, 72
    %553 = vbcast.lane.b32.xlu0 %v515, %s552
    %v554 = vpop.permute.xlu0 %553
    %s556 = sor.u32 256, 80
    %557 = vbcast.lane.b32.xlu0 %v515, %s556
    %v558 = vpop.permute.xlu0 %557
    %s560 = sor.u32 256, 88
    %561 = vbcast.lane.b32.xlu0 %v515, %s560
    %v562 = vpop.permute.xlu0 %561
    %s564 = sor.u32 256, 96
    %565 = vbcast.lane.b32.xlu0 %v515, %s564
    %v566 = vpop.permute.xlu0 %565
    %s568 = sor.u32 256, 104
    %569 = vbcast.lane.b32.xlu0 %v515, %s568
    %v570 = vpop.permute.xlu0 %569
    %s572 = sor.u32 256, 112
    %573 = vbcast.lane.b32.xlu0 %v515, %s572
    %v574 = vpop.permute.xlu0 %573
    %s576 = sor.u32 256, 120
    %577 = vbcast.lane.b32.xlu0 %v515, %s576
    %v578 = vpop.permute.xlu0 %577
    %v580 = vcombine.high %v42, %v42
    %v582 = vunpack.c.l.s4 1966171168
    %v583 = vunpack.c.0.s8 %v582
    %v584 = vlaneseq
    %v585 = vshrl.u32 %v584, 7
    %v586 = vsub.s32 %v583, %v585
    %v587 = vrot.slane %v42, %v586
    %v589 = vunpack.c.l.s4 1966171168
    %v590 = vunpack.c.0.s8 %v589
    %v591 = vlaneseq
    %v592 = vshrl.u32 %v591, 7
    %v593 = vsub.s32 %v590, %v592
    %v594 = vrot.slane %v580, %v593
    %v595 = vcombine.high %v587, %v587
    %v596 = vcombine.high %v594, %v594
    %v598 = vunpack.c.l.s4 1966171168
    %v599 = vunpack.c.0.s8 %v598
    %v600 = vlaneseq
    %v601 = vshrl.u32 %v600, 7
    %v602 = vsub.s32 %v599, %v601
    %v603 = vrot.slane %v587, %v602
    %v605 = vunpack.c.l.s4 1966171168
    %v606 = vunpack.c.0.s8 %v605
    %v607 = vlaneseq
    %v608 = vshrl.u32 %v607, 7
    %v609 = vsub.s32 %v606, %v608
    %v610 = vrot.slane %v594, %v609
    %v612 = vunpack.c.l.s4 1966171168
    %v613 = vunpack.c.0.s8 %v612
    %v614 = vlaneseq
    %v615 = vshrl.u32 %v614, 7
    %v616 = vsub.s32 %v613, %v615
    %v617 = vrot.slane %v595, %v616
    %v619 = vunpack.c.l.s4 1966171168
    %v620 = vunpack.c.0.s8 %v619
    %v621 = vlaneseq
    %v622 = vshrl.u32 %v621, 7
    %v623 = vsub.s32 %v620, %v622
    %v624 = vrot.slane %v596, %v623
    %v625 = vcombine.high %v603, %v603
    %v626 = vcombine.high %v610, %v610
    %v627 = vcombine.high %v617, %v617
    %v628 = vcombine.high %v624, %v624
    %v629 = vlaneseq
    %v630 = vshrl.u32 %v629, 7
    %v631 = vsub.s32 0, %v630
    %v632 = vrot.slane %v603, %v631
    %v633 = vlaneseq
    %v634 = vshrl.u32 %v633, 7
    %v635 = vsub.s32 0, %v634
    %v636 = vrot.slane %v617, %v635
    %v637 = vlaneseq
    %v638 = vshrl.u32 %v637, 7
    %v639 = vsub.s32 0, %v638
    %v640 = vrot.slane %v625, %v639
    %v641 = vlaneseq
    %v642 = vshrl.u32 %v641, 7
    %v643 = vsub.s32 0, %v642
    %v644 = vrot.slane %v627, %v643
    %v645 = vlaneseq
    %v646 = vshrl.u32 %v645, 7
    %v647 = vsub.s32 0, %v646
    %v648 = vrot.slane %v610, %v647
    %v649 = vlaneseq
    %v650 = vshrl.u32 %v649, 7
    %v651 = vsub.s32 0, %v650
    %v652 = vrot.slane %v624, %v651
    %v653 = vlaneseq
    %v654 = vshrl.u32 %v653, 7
    %v655 = vsub.s32 0, %v654
    %v656 = vrot.slane %v626, %v655
    %v657 = vlaneseq
    %v658 = vshrl.u32 %v657, 7
    %v659 = vsub.s32 0, %v658
    %v660 = vrot.slane %v628, %v659
    %vm669 = vcmp.gt.f32.partialorder %v49, %v632
    %vm670 = vcmp.gt.f32.partialorder %v53, %v632
    %vm671 = vcmp.gt.f32.partialorder %v57, %v632
    %vm672 = vcmp.gt.f32.partialorder %v61, %v632
    %vm673 = vcmp.gt.f32.partialorder %v65, %v632
    %vm674 = vcmp.gt.f32.partialorder %v69, %v632
    %vm675 = vcmp.gt.f32.partialorder %v73, %v632
    %vm676 = vcmp.gt.f32.partialorder %v77, %v632
    %vm677 = vcmp.gt.f32.partialorder %v81, %v632
    %vm678 = vcmp.gt.f32.partialorder %v85, %v632
    %vm679 = vcmp.gt.f32.partialorder %v89, %v632
    %vm680 = vcmp.gt.f32.partialorder %v93, %v632
    %vm681 = vcmp.gt.f32.partialorder %v97, %v632
    %vm682 = vcmp.gt.f32.partialorder %v101, %v632
    %vm683 = vcmp.gt.f32.partialorder %v105, %v632
    %vm684 = vcmp.gt.f32.partialorder %v109, %v632
    %vm685 = vcmp.gt.f32.partialorder %v116, %v636
    %vm686 = vcmp.gt.f32.partialorder %v120, %v636
    %vm687 = vcmp.gt.f32.partialorder %v124, %v636
    %vm688 = vcmp.gt.f32.partialorder %v128, %v636
    %vm689 = vcmp.gt.f32.partialorder %v132, %v636
    %vm690 = vcmp.gt.f32.partialorder %v136, %v636
    %vm691 = vcmp.gt.f32.partialorder %v140, %v636
    %vm692 = vcmp.gt.f32.partialorder %v144, %v636
    %vm693 = vcmp.gt.f32.partialorder %v148, %v636
    %vm694 = vcmp.gt.f32.partialorder %v152, %v636
    %vm695 = vcmp.gt.f32.partialorder %v156, %v636
    %vm696 = vcmp.gt.f32.partialorder %v160, %v636
    %vm697 = vcmp.gt.f32.partialorder %v164, %v636
    %vm698 = vcmp.gt.f32.partialorder %v168, %v636
    %vm699 = vcmp.gt.f32.partialorder %v172, %v636
    %vm700 = vcmp.gt.f32.partialorder %v176, %v636
    %vm701 = vcmp.gt.f32.partialorder %v183, %v640
    %vm702 = vcmp.gt.f32.partialorder %v187, %v640
    %vm703 = vcmp.gt.f32.partialorder %v191, %v640
    %vm704 = vcmp.gt.f32.partialorder %v195, %v640
    %vm705 = vcmp.gt.f32.partialorder %v199, %v640
    %vm706 = vcmp.gt.f32.partialorder %v203, %v640
    %vm707 = vcmp.gt.f32.partialorder %v207, %v640
    %vm708 = vcmp.gt.f32.partialorder %v211, %v640
    %vm709 = vcmp.gt.f32.partialorder %v215, %v640
    %vm710 = vcmp.gt.f32.partialorder %v219, %v640
    %vm711 = vcmp.gt.f32.partialorder %v223, %v640
    %vm712 = vcmp.gt.f32.partialorder %v227, %v640
    %vm713 = vcmp.gt.f32.partialorder %v231, %v640
    %vm714 = vcmp.gt.f32.partialorder %v235, %v640
    %vm715 = vcmp.gt.f32.partialorder %v239, %v640
    %vm716 = vcmp.gt.f32.partialorder %v243, %v640
    %vm717 = vcmp.gt.f32.partialorder %v250, %v644
    %vm718 = vcmp.gt.f32.partialorder %v254, %v644
    %vm719 = vcmp.gt.f32.partialorder %v258, %v644
    %vm720 = vcmp.gt.f32.partialorder %v262, %v644
    %vm721 = vcmp.gt.f32.partialorder %v266, %v644
    %vm722 = vcmp.gt.f32.partialorder %v270, %v644
    %vm723 = vcmp.gt.f32.partialorder %v274, %v644
    %vm724 = vcmp.gt.f32.partialorder %v278, %v644
    %vm725 = vcmp.gt.f32.partialorder %v282, %v644
    %vm726 = vcmp.gt.f32.partialorder %v286, %v644
    %vm727 = vcmp.gt.f32.partialorder %v290, %v644
    %vm728 = vcmp.gt.f32.partialorder %v294, %v644
    %vm729 = vcmp.gt.f32.partialorder %v298, %v644
    %vm730 = vcmp.gt.f32.partialorder %v302, %v644
    %vm731 = vcmp.gt.f32.partialorder %v306, %v644
    %vm732 = vcmp.gt.f32.partialorder %v310, %v644
    %vm733 = vcmp.gt.f32.partialorder %v317, %v648
    %vm734 = vcmp.gt.f32.partialorder %v321, %v648
    %vm735 = vcmp.gt.f32.partialorder %v325, %v648
    %vm736 = vcmp.gt.f32.partialorder %v329, %v648
    %vm737 = vcmp.gt.f32.partialorder %v333, %v648
    %vm738 = vcmp.gt.f32.partialorder %v337, %v648
    %vm739 = vcmp.gt.f32.partialorder %v341, %v648
    %vm740 = vcmp.gt.f32.partialorder %v345, %v648
    %vm741 = vcmp.gt.f32.partialorder %v349, %v648
    %vm742 = vcmp.gt.f32.partialorder %v353, %v648
    %vm743 = vcmp.gt.f32.partialorder %v357, %v648
    %vm744 = vcmp.gt.f32.partialorder %v361, %v648
    %vm745 = vcmp.gt.f32.partialorder %v365, %v648
    %vm746 = vcmp.gt.f32.partialorder %v369, %v648
    %vm747 = vcmp.gt.f32.partialorder %v373, %v648
    %vm748 = vcmp.gt.f32.partialorder %v377, %v648
    %vm749 = vcmp.gt.f32.partialorder %v384, %v652
    %vm750 = vcmp.gt.f32.partialorder %v388, %v652
    %vm751 = vcmp.gt.f32.partialorder %v392, %v652
    %vm752 = vcmp.gt.f32.partialorder %v396, %v652
    %vm753 = vcmp.gt.f32.partialorder %v400, %v652
    %vm754 = vcmp.gt.f32.partialorder %v404, %v652
    %vm755 = vcmp.gt.f32.partialorder %v408, %v652
    %vm756 = vcmp.gt.f32.partialorder %v412, %v652
    %vm757 = vcmp.gt.f32.partialorder %v416, %v652
    %vm758 = vcmp.gt.f32.partialorder %v420, %v652
    %vm759 = vcmp.gt.f32.partialorder %v424, %v652
    %vm760 = vcmp.gt.f32.partialorder %v428, %v652
    %vm761 = vcmp.gt.f32.partialorder %v432, %v652
    %vm762 = vcmp.gt.f32.partialorder %v436, %v652
    %vm763 = vcmp.gt.f32.partialorder %v440, %v652
    %vm764 = vcmp.gt.f32.partialorder %v444, %v652
    %vm765 = vcmp.gt.f32.partialorder %v451, %v656
    %vm766 = vcmp.gt.f32.partialorder %v455, %v656
    %vm767 = vcmp.gt.f32.partialorder %v459, %v656
    %vm768 = vcmp.gt.f32.partialorder %v463, %v656
    %vm769 = vcmp.gt.f32.partialorder %v467, %v656
    %vm770 = vcmp.gt.f32.partialorder %v471, %v656
    %vm771 = vcmp.gt.f32.partialorder %v475, %v656
    %vm772 = vcmp.gt.f32.partialorder %v479, %v656
    %vm773 = vcmp.gt.f32.partialorder %v483, %v656
    %vm774 = vcmp.gt.f32.partialorder %v487, %v656
    %vm775 = vcmp.gt.f32.partialorder %v491, %v656
    %vm776 = vcmp.gt.f32.partialorder %v495, %v656
    %vm777 = vcmp.gt.f32.partialorder %v499, %v656
    %vm778 = vcmp.gt.f32.partialorder %v503, %v656
    %vm779 = vcmp.gt.f32.partialorder %v507, %v656
    %vm780 = vcmp.gt.f32.partialorder %v511, %v656
    %vm781 = vcmp.gt.f32.partialorder %v518, %v660
    %vm782 = vcmp.gt.f32.partialorder %v522, %v660
    %vm783 = vcmp.gt.f32.partialorder %v526, %v660
    %vm784 = vcmp.gt.f32.partialorder %v530, %v660
    %vm785 = vcmp.gt.f32.partialorder %v534, %v660
    %vm786 = vcmp.gt.f32.partialorder %v538, %v660
    %vm787 = vcmp.gt.f32.partialorder %v542, %v660
    %vm788 = vcmp.gt.f32.partialorder %v546, %v660
    %vm789 = vcmp.gt.f32.partialorder %v550, %v660
    %vm790 = vcmp.gt.f32.partialorder %v554, %v660
    %vm791 = vcmp.gt.f32.partialorder %v558, %v660
    %vm792 = vcmp.gt.f32.partialorder %v562, %v660
    %vm793 = vcmp.gt.f32.partialorder %v566, %v660
    %vm794 = vcmp.gt.f32.partialorder %v570, %v660
    %vm795 = vcmp.gt.f32.partialorder %v574, %v660
    %vm796 = vcmp.gt.f32.partialorder %v578, %v660
    %v797 = vsel %vm669, 1, 0
    %v798 = vsel %vm670, 1, 0
    %v799 = vsel %vm671, 1, 0
    %v800 = vsel %vm672, 1, 0
    %v801 = vsel %vm673, 1, 0
    %v802 = vsel %vm674, 1, 0
    %v803 = vsel %vm675, 1, 0
    %v804 = vsel %vm676, 1, 0
    %v805 = vsel %vm677, 1, 0
    %v806 = vsel %vm678, 1, 0
    %v807 = vsel %vm679, 1, 0
    %v808 = vsel %vm680, 1, 0
    %v809 = vsel %vm681, 1, 0
    %v810 = vsel %vm682, 1, 0
    %v811 = vsel %vm683, 1, 0
    %v812 = vsel %vm684, 1, 0
    %v813 = vsel %vm685, 1, 0
    %v814 = vsel %vm686, 1, 0
    %v815 = vsel %vm687, 1, 0
    %v816 = vsel %vm688, 1, 0
    %v817 = vsel %vm689, 1, 0
    %v818 = vsel %vm690, 1, 0
    %v819 = vsel %vm691, 1, 0
    %v820 = vsel %vm692, 1, 0
    %v821 = vsel %vm693, 1, 0
    %v822 = vsel %vm694, 1, 0
    %v823 = vsel %vm695, 1, 0
    %v824 = vsel %vm696, 1, 0
    %v825 = vsel %vm697, 1, 0
    %v826 = vsel %vm698, 1, 0
    %v827 = vsel %vm699, 1, 0
    %v828 = vsel %vm700, 1, 0
    %v829 = vsel %vm701, 1, 0
    %v830 = vsel %vm702, 1, 0
    %v831 = vsel %vm703, 1, 0
    %v832 = vsel %vm704, 1, 0
    %v833 = vsel %vm705, 1, 0
    %v834 = vsel %vm706, 1, 0
    %v835 = vsel %vm707, 1, 0
    %v836 = vsel %vm708, 1, 0
    %v837 = vsel %vm709, 1, 0
    %v838 = vsel %vm710, 1, 0
    %v839 = vsel %vm711, 1, 0
    %v840 = vsel %vm712, 1, 0
    %v841 = vsel %vm713, 1, 0
    %v842 = vsel %vm714, 1, 0
    %v843 = vsel %vm715, 1, 0
    %v844 = vsel %vm716, 1, 0
    %v845 = vsel %vm717, 1, 0
    %v846 = vsel %vm718, 1, 0
    %v847 = vsel %vm719, 1, 0
    %v848 = vsel %vm720, 1, 0
    %v849 = vsel %vm721, 1, 0
    %v850 = vsel %vm722, 1, 0
    %v851 = vsel %vm723, 1, 0
    %v852 = vsel %vm724, 1, 0
    %v853 = vsel %vm725, 1, 0
    %v854 = vsel %vm726, 1, 0
    %v855 = vsel %vm727, 1, 0
    %v856 = vsel %vm728, 1, 0
    %v857 = vsel %vm729, 1, 0
    %v858 = vsel %vm730, 1, 0
    %v859 = vsel %vm731, 1, 0
    %v860 = vsel %vm732, 1, 0
    %v861 = vsel %vm733, 1, 0
    %v862 = vsel %vm734, 1, 0
    %v863 = vsel %vm735, 1, 0
    %v864 = vsel %vm736, 1, 0
    %v865 = vsel %vm737, 1, 0
    %v866 = vsel %vm738, 1, 0
    %v867 = vsel %vm739, 1, 0
    %v868 = vsel %vm740, 1, 0
    %v869 = vsel %vm741, 1, 0
    %v870 = vsel %vm742, 1, 0
    %v871 = vsel %vm743, 1, 0
    %v872 = vsel %vm744, 1, 0
    %v873 = vsel %vm745, 1, 0
    %v874 = vsel %vm746, 1, 0
    %v875 = vsel %vm747, 1, 0
    %v876 = vsel %vm748, 1, 0
    %v877 = vsel %vm749, 1, 0
    %v878 = vsel %vm750, 1, 0
    %v879 = vsel %vm751, 1, 0
    %v880 = vsel %vm752, 1, 0
    %v881 = vsel %vm753, 1, 0
    %v882 = vsel %vm754, 1, 0
    %v883 = vsel %vm755, 1, 0
    %v884 = vsel %vm756, 1, 0
    %v885 = vsel %vm757, 1, 0
    %v886 = vsel %vm758, 1, 0
    %v887 = vsel %vm759, 1, 0
    %v888 = vsel %vm760, 1, 0
    %v889 = vsel %vm761, 1, 0
    %v890 = vsel %vm762, 1, 0
    %v891 = vsel %vm763, 1, 0
    %v892 = vsel %vm764, 1, 0
    %v893 = vsel %vm765, 1, 0
    %v894 = vsel %vm766, 1, 0
    %v895 = vsel %vm767, 1, 0
    %v896 = vsel %vm768, 1, 0
    %v897 = vsel %vm769, 1, 0
    %v898 = vsel %vm770, 1, 0
    %v899 = vsel %vm771, 1, 0
    %v900 = vsel %vm772, 1, 0
    %v901 = vsel %vm773, 1, 0
    %v902 = vsel %vm774, 1, 0
    %v903 = vsel %vm775, 1, 0
    %v904 = vsel %vm776, 1, 0
    %v905 = vsel %vm777, 1, 0
    %v906 = vsel %vm778, 1, 0
    %v907 = vsel %vm779, 1, 0
    %v908 = vsel %vm780, 1, 0
    %v909 = vsel %vm781, 1, 0
    %v910 = vsel %vm782, 1, 0
    %v911 = vsel %vm783, 1, 0
    %v912 = vsel %vm784, 1, 0
    %v913 = vsel %vm785, 1, 0
    %v914 = vsel %vm786, 1, 0
    %v915 = vsel %vm787, 1, 0
    %v916 = vsel %vm788, 1, 0
    %v917 = vsel %vm789, 1, 0
    %v918 = vsel %vm790, 1, 0
    %v919 = vsel %vm791, 1, 0
    %v920 = vsel %vm792, 1, 0
    %v921 = vsel %vm793, 1, 0
    %v922 = vsel %vm794, 1, 0
    %v923 = vsel %vm795, 1, 0
    %v924 = vsel %vm796, 1, 0
    %v925 = vcvt.s32.f32 %v797
    %v926 = vcvt.s32.f32 %v798
    %v927 = vcvt.s32.f32 %v799
    %v928 = vcvt.s32.f32 %v800
    %v929 = vcvt.s32.f32 %v801
    %v930 = vcvt.s32.f32 %v802
    %v931 = vcvt.s32.f32 %v803
    %v932 = vcvt.s32.f32 %v804
    %v933 = vcvt.s32.f32 %v805
    %v934 = vcvt.s32.f32 %v806
    %v935 = vcvt.s32.f32 %v807
    %v936 = vcvt.s32.f32 %v808
    %v937 = vcvt.s32.f32 %v809
    %v938 = vcvt.s32.f32 %v810
    %v939 = vcvt.s32.f32 %v811
    %v940 = vcvt.s32.f32 %v812
    %v941 = vcvt.s32.f32 %v813
    %v942 = vcvt.s32.f32 %v814
    %v943 = vcvt.s32.f32 %v815
    %v944 = vcvt.s32.f32 %v816
    %v945 = vcvt.s32.f32 %v817
    %v946 = vcvt.s32.f32 %v818
    %v947 = vcvt.s32.f32 %v819
    %v948 = vcvt.s32.f32 %v820
    %v949 = vcvt.s32.f32 %v821
    %v950 = vcvt.s32.f32 %v822
    %v951 = vcvt.s32.f32 %v823
    %v952 = vcvt.s32.f32 %v824
    %v953 = vcvt.s32.f32 %v825
    %v954 = vcvt.s32.f32 %v826
    %v955 = vcvt.s32.f32 %v827
    %v956 = vcvt.s32.f32 %v828
    %v957 = vcvt.s32.f32 %v829
    %v958 = vcvt.s32.f32 %v830
    %v959 = vcvt.s32.f32 %v831
    %v960 = vcvt.s32.f32 %v832
    %v961 = vcvt.s32.f32 %v833
    %v962 = vcvt.s32.f32 %v834
    %v963 = vcvt.s32.f32 %v835
    %v964 = vcvt.s32.f32 %v836
    %v965 = vcvt.s32.f32 %v837
    %v966 = vcvt.s32.f32 %v838
    %v967 = vcvt.s32.f32 %v839
    %v968 = vcvt.s32.f32 %v840
    %v969 = vcvt.s32.f32 %v841
    %v970 = vcvt.s32.f32 %v842
    %v971 = vcvt.s32.f32 %v843
    %v972 = vcvt.s32.f32 %v844
    %v973 = vcvt.s32.f32 %v845
    %v974 = vcvt.s32.f32 %v846
    %v975 = vcvt.s32.f32 %v847
    %v976 = vcvt.s32.f32 %v848
    %v977 = vcvt.s32.f32 %v849
    %v978 = vcvt.s32.f32 %v850
    %v979 = vcvt.s32.f32 %v851
    %v980 = vcvt.s32.f32 %v852
    %v981 = vcvt.s32.f32 %v853
    %v982 = vcvt.s32.f32 %v854
    %v983 = vcvt.s32.f32 %v855
    %v984 = vcvt.s32.f32 %v856
    %v985 = vcvt.s32.f32 %v857
    %v986 = vcvt.s32.f32 %v858
    %v987 = vcvt.s32.f32 %v859
    %v988 = vcvt.s32.f32 %v860
    %v989 = vcvt.s32.f32 %v861
    %v990 = vcvt.s32.f32 %v862
    %v991 = vcvt.s32.f32 %v863
    %v992 = vcvt.s32.f32 %v864
    %v993 = vcvt.s32.f32 %v865
    %v994 = vcvt.s32.f32 %v866
    %v995 = vcvt.s32.f32 %v867
    %v996 = vcvt.s32.f32 %v868
    %v997 = vcvt.s32.f32 %v869
    %v998 = vcvt.s32.f32 %v870
    %v999 = vcvt.s32.f32 %v871
    %v1000 = vcvt.s32.f32 %v872
    %v1001 = vcvt.s32.f32 %v873
    %v1002 = vcvt.s32.f32 %v874
    %v1003 = vcvt.s32.f32 %v875
    %v1004 = vcvt.s32.f32 %v876
    %v1005 = vcvt.s32.f32 %v877
    %v1006 = vcvt.s32.f32 %v878
    %v1007 = vcvt.s32.f32 %v879
    %v1008 = vcvt.s32.f32 %v880
    %v1009 = vcvt.s32.f32 %v881
    %v1010 = vcvt.s32.f32 %v882
    %v1011 = vcvt.s32.f32 %v883
    %v1012 = vcvt.s32.f32 %v884
    %v1013 = vcvt.s32.f32 %v885
    %v1014 = vcvt.s32.f32 %v886
    %v1015 = vcvt.s32.f32 %v887
    %v1016 = vcvt.s32.f32 %v888
    %v1017 = vcvt.s32.f32 %v889
    %v1018 = vcvt.s32.f32 %v890
    %v1019 = vcvt.s32.f32 %v891
    %v1020 = vcvt.s32.f32 %v892
    %v1021 = vcvt.s32.f32 %v893
    %v1022 = vcvt.s32.f32 %v894
    %v1023 = vcvt.s32.f32 %v895
    %v1024 = vcvt.s32.f32 %v896
    %v1025 = vcvt.s32.f32 %v897
    %v1026 = vcvt.s32.f32 %v898
    %v1027 = vcvt.s32.f32 %v899
    %v1028 = vcvt.s32.f32 %v900
    %v1029 = vcvt.s32.f32 %v901
    %v1030 = vcvt.s32.f32 %v902
    %v1031 = vcvt.s32.f32 %v903
    %v1032 = vcvt.s32.f32 %v904
    %v1033 = vcvt.s32.f32 %v905
    %v1034 = vcvt.s32.f32 %v906
    %v1035 = vcvt.s32.f32 %v907
    %v1036 = vcvt.s32.f32 %v908
    %v1037 = vcvt.s32.f32 %v909
    %v1038 = vcvt.s32.f32 %v910
    %v1039 = vcvt.s32.f32 %v911
    %v1040 = vcvt.s32.f32 %v912
    %v1041 = vcvt.s32.f32 %v913
    %v1042 = vcvt.s32.f32 %v914
    %v1043 = vcvt.s32.f32 %v915
    %v1044 = vcvt.s32.f32 %v916
    %v1045 = vcvt.s32.f32 %v917
    %v1046 = vcvt.s32.f32 %v918
    %v1047 = vcvt.s32.f32 %v919
    %v1048 = vcvt.s32.f32 %v920
    %v1049 = vcvt.s32.f32 %v921
    %v1050 = vcvt.s32.f32 %v922
    %v1051 = vcvt.s32.f32 %v923
    %v1052 = vcvt.s32.f32 %v924
    %vm1053 = vcmp.ge.f32.partialorder %v49, %v632
    %vm1054 = vcmp.ge.f32.partialorder %v53, %v632
    %vm1055 = vcmp.ge.f32.partialorder %v57, %v632
    %vm1056 = vcmp.ge.f32.partialorder %v61, %v632
    %vm1057 = vcmp.ge.f32.partialorder %v65, %v632
    %vm1058 = vcmp.ge.f32.partialorder %v69, %v632
    %vm1059 = vcmp.ge.f32.partialorder %v73, %v632
    %vm1060 = vcmp.ge.f32.partialorder %v77, %v632
    %vm1061 = vcmp.ge.f32.partialorder %v81, %v632
    %vm1062 = vcmp.ge.f32.partialorder %v85, %v632
    %vm1063 = vcmp.ge.f32.partialorder %v89, %v632
    %vm1064 = vcmp.ge.f32.partialorder %v93, %v632
    %vm1065 = vcmp.ge.f32.partialorder %v97, %v632
    %vm1066 = vcmp.ge.f32.partialorder %v101, %v632
    %vm1067 = vcmp.ge.f32.partialorder %v105, %v632
    %vm1068 = vcmp.ge.f32.partialorder %v109, %v632
    %vm1069 = vcmp.ge.f32.partialorder %v116, %v636
    %vm1070 = vcmp.ge.f32.partialorder %v120, %v636
    %vm1071 = vcmp.ge.f32.partialorder %v124, %v636
    %vm1072 = vcmp.ge.f32.partialorder %v128, %v636
    %vm1073 = vcmp.ge.f32.partialorder %v132, %v636
    %vm1074 = vcmp.ge.f32.partialorder %v136, %v636
    %vm1075 = vcmp.ge.f32.partialorder %v140, %v636
    %vm1076 = vcmp.ge.f32.partialorder %v144, %v636
    %vm1077 = vcmp.ge.f32.partialorder %v148, %v636
    %vm1078 = vcmp.ge.f32.partialorder %v152, %v636
    %vm1079 = vcmp.ge.f32.partialorder %v156, %v636
    %vm1080 = vcmp.ge.f32.partialorder %v160, %v636
    %vm1081 = vcmp.ge.f32.partialorder %v164, %v636
    %vm1082 = vcmp.ge.f32.partialorder %v168, %v636
    %vm1083 = vcmp.ge.f32.partialorder %v172, %v636
    %vm1084 = vcmp.ge.f32.partialorder %v176, %v636
    %vm1085 = vcmp.ge.f32.partialorder %v183, %v640
    %vm1086 = vcmp.ge.f32.partialorder %v187, %v640
    %vm1087 = vcmp.ge.f32.partialorder %v191, %v640
    %vm1088 = vcmp.ge.f32.partialorder %v195, %v640
    %vm1089 = vcmp.ge.f32.partialorder %v199, %v640
    %vm1090 = vcmp.ge.f32.partialorder %v203, %v640
    %vm1091 = vcmp.ge.f32.partialorder %v207, %v640
    %vm1092 = vcmp.ge.f32.partialorder %v211, %v640
    %vm1093 = vcmp.ge.f32.partialorder %v215, %v640
    %vm1094 = vcmp.ge.f32.partialorder %v219, %v640
    %vm1095 = vcmp.ge.f32.partialorder %v223, %v640
    %vm1096 = vcmp.ge.f32.partialorder %v227, %v640
    %vm1097 = vcmp.ge.f32.partialorder %v231, %v640
    %vm1098 = vcmp.ge.f32.partialorder %v235, %v640
    %vm1099 = vcmp.ge.f32.partialorder %v239, %v640
    %vm1100 = vcmp.ge.f32.partialorder %v243, %v640
    %vm1101 = vcmp.ge.f32.partialorder %v250, %v644
    %vm1102 = vcmp.ge.f32.partialorder %v254, %v644
    %vm1103 = vcmp.ge.f32.partialorder %v258, %v644
    %vm1104 = vcmp.ge.f32.partialorder %v262, %v644
    %vm1105 = vcmp.ge.f32.partialorder %v266, %v644
    %vm1106 = vcmp.ge.f32.partialorder %v270, %v644
    %vm1107 = vcmp.ge.f32.partialorder %v274, %v644
    %vm1108 = vcmp.ge.f32.partialorder %v278, %v644
    %vm1109 = vcmp.ge.f32.partialorder %v282, %v644
    %vm1110 = vcmp.ge.f32.partialorder %v286, %v644
    %vm1111 = vcmp.ge.f32.partialorder %v290, %v644
    %vm1112 = vcmp.ge.f32.partialorder %v294, %v644
    %vm1113 = vcmp.ge.f32.partialorder %v298, %v644
    %vm1114 = vcmp.ge.f32.partialorder %v302, %v644
    %vm1115 = vcmp.ge.f32.partialorder %v306, %v644
    %vm1116 = vcmp.ge.f32.partialorder %v310, %v644
    %vm1117 = vcmp.ge.f32.partialorder %v317, %v648
    %vm1118 = vcmp.ge.f32.partialorder %v321, %v648
    %vm1119 = vcmp.ge.f32.partialorder %v325, %v648
    %vm1120 = vcmp.ge.f32.partialorder %v329, %v648
    %vm1121 = vcmp.ge.f32.partialorder %v333, %v648
    %vm1122 = vcmp.ge.f32.partialorder %v337, %v648
    %vm1123 = vcmp.ge.f32.partialorder %v341, %v648
    %vm1124 = vcmp.ge.f32.partialorder %v345, %v648
    %vm1125 = vcmp.ge.f32.partialorder %v349, %v648
    %vm1126 = vcmp.ge.f32.partialorder %v353, %v648
    %vm1127 = vcmp.ge.f32.partialorder %v357, %v648
    %vm1128 = vcmp.ge.f32.partialorder %v361, %v648
    %vm1129 = vcmp.ge.f32.partialorder %v365, %v648
    %vm1130 = vcmp.ge.f32.partialorder %v369, %v648
    %vm1131 = vcmp.ge.f32.partialorder %v373, %v648
    %vm1132 = vcmp.ge.f32.partialorder %v377, %v648
    %vm1133 = vcmp.ge.f32.partialorder %v384, %v652
    %vm1134 = vcmp.ge.f32.partialorder %v388, %v652
    %vm1135 = vcmp.ge.f32.partialorder %v392, %v652
    %vm1136 = vcmp.ge.f32.partialorder %v396, %v652
    %vm1137 = vcmp.ge.f32.partialorder %v400, %v652
    %vm1138 = vcmp.ge.f32.partialorder %v404, %v652
    %vm1139 = vcmp.ge.f32.partialorder %v408, %v652
    %vm1140 = vcmp.ge.f32.partialorder %v412, %v652
    %vm1141 = vcmp.ge.f32.partialorder %v416, %v652
    %vm1142 = vcmp.ge.f32.partialorder %v420, %v652
    %vm1143 = vcmp.ge.f32.partialorder %v424, %v652
    %vm1144 = vcmp.ge.f32.partialorder %v428, %v652
    %vm1145 = vcmp.ge.f32.partialorder %v432, %v652
    %vm1146 = vcmp.ge.f32.partialorder %v436, %v652
    %vm1147 = vcmp.ge.f32.partialorder %v440, %v652
    %vm1148 = vcmp.ge.f32.partialorder %v444, %v652
    %vm1149 = vcmp.ge.f32.partialorder %v451, %v656
    %vm1150 = vcmp.ge.f32.partialorder %v455, %v656
    %vm1151 = vcmp.ge.f32.partialorder %v459, %v656
    %vm1152 = vcmp.ge.f32.partialorder %v463, %v656
    %vm1153 = vcmp.ge.f32.partialorder %v467, %v656
    %vm1154 = vcmp.ge.f32.partialorder %v471, %v656
    %vm1155 = vcmp.ge.f32.partialorder %v475, %v656
    %vm1156 = vcmp.ge.f32.partialorder %v479, %v656
    %vm1157 = vcmp.ge.f32.partialorder %v483, %v656
    %vm1158 = vcmp.ge.f32.partialorder %v487, %v656
    %vm1159 = vcmp.ge.f32.partialorder %v491, %v656
    %vm1160 = vcmp.ge.f32.partialorder %v495, %v656
    %vm1161 = vcmp.ge.f32.partialorder %v499, %v656
    %vm1162 = vcmp.ge.f32.partialorder %v503, %v656
    %vm1163 = vcmp.ge.f32.partialorder %v507, %v656
    %vm1164 = vcmp.ge.f32.partialorder %v511, %v656
    %vm1165 = vcmp.ge.f32.partialorder %v518, %v660
    %vm1166 = vcmp.ge.f32.partialorder %v522, %v660
    %vm1167 = vcmp.ge.f32.partialorder %v526, %v660
    %vm1168 = vcmp.ge.f32.partialorder %v530, %v660
    %vm1169 = vcmp.ge.f32.partialorder %v534, %v660
    %vm1170 = vcmp.ge.f32.partialorder %v538, %v660
    %vm1171 = vcmp.ge.f32.partialorder %v542, %v660
    %vm1172 = vcmp.ge.f32.partialorder %v546, %v660
    %vm1173 = vcmp.ge.f32.partialorder %v550, %v660
    %vm1174 = vcmp.ge.f32.partialorder %v554, %v660
    %vm1175 = vcmp.ge.f32.partialorder %v558, %v660
    %vm1176 = vcmp.ge.f32.partialorder %v562, %v660
    %vm1177 = vcmp.ge.f32.partialorder %v566, %v660
    %vm1178 = vcmp.ge.f32.partialorder %v570, %v660
    %vm1179 = vcmp.ge.f32.partialorder %v574, %v660
    %vm1180 = vcmp.ge.f32.partialorder %v578, %v660
    %v1181 = vsel %vm1053, 1, 0
    %v1182 = vsel %vm1054, 1, 0
    %v1183 = vsel %vm1055, 1, 0
    %v1184 = vsel %vm1056, 1, 0
    %v1185 = vsel %vm1057, 1, 0
    %v1186 = vsel %vm1058, 1, 0
    %v1187 = vsel %vm1059, 1, 0
    %v1188 = vsel %vm1060, 1, 0
    %v1189 = vsel %vm1061, 1, 0
    %v1190 = vsel %vm1062, 1, 0
    %v1191 = vsel %vm1063, 1, 0
    %v1192 = vsel %vm1064, 1, 0
    %v1193 = vsel %vm1065, 1, 0
    %v1194 = vsel %vm1066, 1, 0
    %v1195 = vsel %vm1067, 1, 0
    %v1196 = vsel %vm1068, 1, 0
    %v1197 = vsel %vm1069, 1, 0
    %v1198 = vsel %vm1070, 1, 0
    %v1199 = vsel %vm1071, 1, 0
    %v1200 = vsel %vm1072, 1, 0
    %v1201 = vsel %vm1073, 1, 0
    %v1202 = vsel %vm1074, 1, 0
    %v1203 = vsel %vm1075, 1, 0
    %v1204 = vsel %vm1076, 1, 0
    %v1205 = vsel %vm1077, 1, 0
    %v1206 = vsel %vm1078, 1, 0
    %v1207 = vsel %vm1079, 1, 0
    %v1208 = vsel %vm1080, 1, 0
    %v1209 = vsel %vm1081, 1, 0
    %v1210 = vsel %vm1082, 1, 0
    %v1211 = vsel %vm1083, 1, 0
    %v1212 = vsel %vm1084, 1, 0
    %v1213 = vsel %vm1085, 1, 0
    %v1214 = vsel %vm1086, 1, 0
    %v1215 = vsel %vm1087, 1, 0
    %v1216 = vsel %vm1088, 1, 0
    %v1217 = vsel %vm1089, 1, 0
    %v1218 = vsel %vm1090, 1, 0
    %v1219 = vsel %vm1091, 1, 0
    %v1220 = vsel %vm1092, 1, 0
    %v1221 = vsel %vm1093, 1, 0
    %v1222 = vsel %vm1094, 1, 0
    %v1223 = vsel %vm1095, 1, 0
    %v1224 = vsel %vm1096, 1, 0
    %v1225 = vsel %vm1097, 1, 0
    %v1226 = vsel %vm1098, 1, 0
    %v1227 = vsel %vm1099, 1, 0
    %v1228 = vsel %vm1100, 1, 0
    %v1229 = vsel %vm1101, 1, 0
    %v1230 = vsel %vm1102, 1, 0
    %v1231 = vsel %vm1103, 1, 0
    %v1232 = vsel %vm1104, 1, 0
    %v1233 = vsel %vm1105, 1, 0
    %v1234 = vsel %vm1106, 1, 0
    %v1235 = vsel %vm1107, 1, 0
    %v1236 = vsel %vm1108, 1, 0
    %v1237 = vsel %vm1109, 1, 0
    %v1238 = vsel %vm1110, 1, 0
    %v1239 = vsel %vm1111, 1, 0
    %v1240 = vsel %vm1112, 1, 0
    %v1241 = vsel %vm1113, 1, 0
    %v1242 = vsel %vm1114, 1, 0
    %v1243 = vsel %vm1115, 1, 0
    %v1244 = vsel %vm1116, 1, 0
    %v1245 = vsel %vm1117, 1, 0
    %v1246 = vsel %vm1118, 1, 0
    %v1247 = vsel %vm1119, 1, 0
    %v1248 = vsel %vm1120, 1, 0
    %v1249 = vsel %vm1121, 1, 0
    %v1250 = vsel %vm1122, 1, 0
    %v1251 = vsel %vm1123, 1, 0
    %v1252 = vsel %vm1124, 1, 0
    %v1253 = vsel %vm1125, 1, 0
    %v1254 = vsel %vm1126, 1, 0
    %v1255 = vsel %vm1127, 1, 0
    %v1256 = vsel %vm1128, 1, 0
    %v1257 = vsel %vm1129, 1, 0
    %v1258 = vsel %vm1130, 1, 0
    %v1259 = vsel %vm1131, 1, 0
    %v1260 = vsel %vm1132, 1, 0
    %v1261 = vsel %vm1133, 1, 0
    %v1262 = vsel %vm1134, 1, 0
    %v1263 = vsel %vm1135, 1, 0
    %v1264 = vsel %vm1136, 1, 0
    %v1265 = vsel %vm1137, 1, 0
    %v1266 = vsel %vm1138, 1, 0
    %v1267 = vsel %vm1139, 1, 0
    %v1268 = vsel %vm1140, 1, 0
    %v1269 = vsel %vm1141, 1, 0
    %v1270 = vsel %vm1142, 1, 0
    %v1271 = vsel %vm1143, 1, 0
    %v1272 = vsel %vm1144, 1, 0
    %v1273 = vsel %vm1145, 1, 0
    %v1274 = vsel %vm1146, 1, 0
    %v1275 = vsel %vm1147, 1, 0
    %v1276 = vsel %vm1148, 1, 0
    %v1277 = vsel %vm1149, 1, 0
    %v1278 = vsel %vm1150, 1, 0
    %v1279 = vsel %vm1151, 1, 0
    %v1280 = vsel %vm1152, 1, 0
    %v1281 = vsel %vm1153, 1, 0
    %v1282 = vsel %vm1154, 1, 0
    %v1283 = vsel %vm1155, 1, 0
    %v1284 = vsel %vm1156, 1, 0
    %v1285 = vsel %vm1157, 1, 0
    %v1286 = vsel %vm1158, 1, 0
    %v1287 = vsel %vm1159, 1, 0
    %v1288 = vsel %vm1160, 1, 0
    %v1289 = vsel %vm1161, 1, 0
    %v1290 = vsel %vm1162, 1, 0
    %v1291 = vsel %vm1163, 1, 0
    %v1292 = vsel %vm1164, 1, 0
    %v1293 = vsel %vm1165, 1, 0
    %v1294 = vsel %vm1166, 1, 0
    %v1295 = vsel %vm1167, 1, 0
    %v1296 = vsel %vm1168, 1, 0
    %v1297 = vsel %vm1169, 1, 0
    %v1298 = vsel %vm1170, 1, 0
    %v1299 = vsel %vm1171, 1, 0
    %v1300 = vsel %vm1172, 1, 0
    %v1301 = vsel %vm1173, 1, 0
    %v1302 = vsel %vm1174, 1, 0
    %v1303 = vsel %vm1175, 1, 0
    %v1304 = vsel %vm1176, 1, 0
    %v1305 = vsel %vm1177, 1, 0
    %v1306 = vsel %vm1178, 1, 0
    %v1307 = vsel %vm1179, 1, 0
    %v1308 = vsel %vm1180, 1, 0
    %v1309 = vcvt.s32.f32 %v1181
    %v1310 = vcvt.s32.f32 %v1182
    %v1311 = vcvt.s32.f32 %v1183
    %v1312 = vcvt.s32.f32 %v1184
    %v1313 = vcvt.s32.f32 %v1185
    %v1314 = vcvt.s32.f32 %v1186
    %v1315 = vcvt.s32.f32 %v1187
    %v1316 = vcvt.s32.f32 %v1188
    %v1317 = vcvt.s32.f32 %v1189
    %v1318 = vcvt.s32.f32 %v1190
    %v1319 = vcvt.s32.f32 %v1191
    %v1320 = vcvt.s32.f32 %v1192
    %v1321 = vcvt.s32.f32 %v1193
    %v1322 = vcvt.s32.f32 %v1194
    %v1323 = vcvt.s32.f32 %v1195
    %v1324 = vcvt.s32.f32 %v1196
    %v1325 = vcvt.s32.f32 %v1197
    %v1326 = vcvt.s32.f32 %v1198
    %v1327 = vcvt.s32.f32 %v1199
    %v1328 = vcvt.s32.f32 %v1200
    %v1329 = vcvt.s32.f32 %v1201
    %v1330 = vcvt.s32.f32 %v1202
    %v1331 = vcvt.s32.f32 %v1203
    %v1332 = vcvt.s32.f32 %v1204
    %v1333 = vcvt.s32.f32 %v1205
    %v1334 = vcvt.s32.f32 %v1206
    %v1335 = vcvt.s32.f32 %v1207
    %v1336 = vcvt.s32.f32 %v1208
    %v1337 = vcvt.s32.f32 %v1209
    %v1338 = vcvt.s32.f32 %v1210
    %v1339 = vcvt.s32.f32 %v1211
    %v1340 = vcvt.s32.f32 %v1212
    %v1341 = vcvt.s32.f32 %v1213
    %v1342 = vcvt.s32.f32 %v1214
    %v1343 = vcvt.s32.f32 %v1215
    %v1344 = vcvt.s32.f32 %v1216
    %v1345 = vcvt.s32.f32 %v1217
    %v1346 = vcvt.s32.f32 %v1218
    %v1347 = vcvt.s32.f32 %v1219
    %v1348 = vcvt.s32.f32 %v1220
    %v1349 = vcvt.s32.f32 %v1221
    %v1350 = vcvt.s32.f32 %v1222
    %v1351 = vcvt.s32.f32 %v1223
    %v1352 = vcvt.s32.f32 %v1224
    %v1353 = vcvt.s32.f32 %v1225
    %v1354 = vcvt.s32.f32 %v1226
    %v1355 = vcvt.s32.f32 %v1227
    %v1356 = vcvt.s32.f32 %v1228
    %v1357 = vcvt.s32.f32 %v1229
    %v1358 = vcvt.s32.f32 %v1230
    %v1359 = vcvt.s32.f32 %v1231
    %v1360 = vcvt.s32.f32 %v1232
    %v1361 = vcvt.s32.f32 %v1233
    %v1362 = vcvt.s32.f32 %v1234
    %v1363 = vcvt.s32.f32 %v1235
    %v1364 = vcvt.s32.f32 %v1236
    %v1365 = vcvt.s32.f32 %v1237
    %v1366 = vcvt.s32.f32 %v1238
    %v1367 = vcvt.s32.f32 %v1239
    %v1368 = vcvt.s32.f32 %v1240
    %v1369 = vcvt.s32.f32 %v1241
    %v1370 = vcvt.s32.f32 %v1242
    %v1371 = vcvt.s32.f32 %v1243
    %v1372 = vcvt.s32.f32 %v1244
    %v1373 = vcvt.s32.f32 %v1245
    %v1374 = vcvt.s32.f32 %v1246
    %v1375 = vcvt.s32.f32 %v1247
    %v1376 = vcvt.s32.f32 %v1248
    %v1377 = vcvt.s32.f32 %v1249
    %v1378 = vcvt.s32.f32 %v1250
    %v1379 = vcvt.s32.f32 %v1251
    %v1380 = vcvt.s32.f32 %v1252
    %v1381 = vcvt.s32.f32 %v1253
    %v1382 = vcvt.s32.f32 %v1254
    %v1383 = vcvt.s32.f32 %v1255
    %v1384 = vcvt.s32.f32 %v1256
    %v1385 = vcvt.s32.f32 %v1257
    %v1386 = vcvt.s32.f32 %v1258
    %v1387 = vcvt.s32.f32 %v1259
    %v1388 = vcvt.s32.f32 %v1260
    %v1389 = vcvt.s32.f32 %v1261
    %v1390 = vcvt.s32.f32 %v1262
    %v1391 = vcvt.s32.f32 %v1263
    %v1392 = vcvt.s32.f32 %v1264
    %v1393 = vcvt.s32.f32 %v1265
    %v1394 = vcvt.s32.f32 %v1266
    %v1395 = vcvt.s32.f32 %v1267
    %v1396 = vcvt.s32.f32 %v1268
    %v1397 = vcvt.s32.f32 %v1269
    %v1398 = vcvt.s32.f32 %v1270
    %v1399 = vcvt.s32.f32 %v1271
    %v1400 = vcvt.s32.f32 %v1272
    %v1401 = vcvt.s32.f32 %v1273
    %v1402 = vcvt.s32.f32 %v1274
    %v1403 = vcvt.s32.f32 %v1275
    %v1404 = vcvt.s32.f32 %v1276
    %v1405 = vcvt.s32.f32 %v1277
    %v1406 = vcvt.s32.f32 %v1278
    %v1407 = vcvt.s32.f32 %v1279
    %v1408 = vcvt.s32.f32 %v1280
    %v1409 = vcvt.s32.f32 %v1281
    %v1410 = vcvt.s32.f32 %v1282
    %v1411 = vcvt.s32.f32 %v1283
    %v1412 = vcvt.s32.f32 %v1284
    %v1413 = vcvt.s32.f32 %v1285
    %v1414 = vcvt.s32.f32 %v1286
    %v1415 = vcvt.s32.f32 %v1287
    %v1416 = vcvt.s32.f32 %v1288
    %v1417 = vcvt.s32.f32 %v1289
    %v1418 = vcvt.s32.f32 %v1290
    %v1419 = vcvt.s32.f32 %v1291
    %v1420 = vcvt.s32.f32 %v1292
    %v1421 = vcvt.s32.f32 %v1293
    %v1422 = vcvt.s32.f32 %v1294
    %v1423 = vcvt.s32.f32 %v1295
    %v1424 = vcvt.s32.f32 %v1296
    %v1425 = vcvt.s32.f32 %v1297
    %v1426 = vcvt.s32.f32 %v1298
    %v1427 = vcvt.s32.f32 %v1299
    %v1428 = vcvt.s32.f32 %v1300
    %v1429 = vcvt.s32.f32 %v1301
    %v1430 = vcvt.s32.f32 %v1302
    %v1431 = vcvt.s32.f32 %v1303
    %v1432 = vcvt.s32.f32 %v1304
    %v1433 = vcvt.s32.f32 %v1305
    %v1434 = vcvt.s32.f32 %v1306
    %v1435 = vcvt.s32.f32 %v1307
    %v1436 = vcvt.s32.f32 %v1308
    %v1437 = vadd.f32 %v925, %v1309
    %v1438 = vadd.f32 %v926, %v1310
    %v1439 = vadd.f32 %v927, %v1311
    %v1440 = vadd.f32 %v928, %v1312
    %v1441 = vadd.f32 %v929, %v1313
    %v1442 = vadd.f32 %v930, %v1314
    %v1443 = vadd.f32 %v931, %v1315
    %v1444 = vadd.f32 %v932, %v1316
    %v1445 = vadd.f32 %v933, %v1317
    %v1446 = vadd.f32 %v934, %v1318
    %v1447 = vadd.f32 %v935, %v1319
    %v1448 = vadd.f32 %v936, %v1320
    %v1449 = vadd.f32 %v937, %v1321
    %v1450 = vadd.f32 %v938, %v1322
    %v1451 = vadd.f32 %v939, %v1323
    %v1452 = vadd.f32 %v940, %v1324
    %v1453 = vadd.f32 %v941, %v1325
    %v1454 = vadd.f32 %v942, %v1326
    %v1455 = vadd.f32 %v943, %v1327
    %v1456 = vadd.f32 %v944, %v1328
    %v1457 = vadd.f32 %v945, %v1329
    %v1458 = vadd.f32 %v946, %v1330
    %v1459 = vadd.f32 %v947, %v1331
    %v1460 = vadd.f32 %v948, %v1332
    %v1461 = vadd.f32 %v949, %v1333
    %v1462 = vadd.f32 %v950, %v1334
    %v1463 = vadd.f32 %v951, %v1335
    %v1464 = vadd.f32 %v952, %v1336
    %v1465 = vadd.f32 %v953, %v1337
    %v1466 = vadd.f32 %v954, %v1338
    %v1467 = vadd.f32 %v955, %v1339
    %v1468 = vadd.f32 %v956, %v1340
    %v1469 = vadd.f32 %v957, %v1341
    %v1470 = vadd.f32 %v958, %v1342
    %v1471 = vadd.f32 %v959, %v1343
    %v1472 = vadd.f32 %v960, %v1344
    %v1473 = vadd.f32 %v961, %v1345
    %v1474 = vadd.f32 %v962, %v1346
    %v1475 = vadd.f32 %v963, %v1347
    %v1476 = vadd.f32 %v964, %v1348
    %v1477 = vadd.f32 %v965, %v1349
    %v1478 = vadd.f32 %v966, %v1350
    %v1479 = vadd.f32 %v967, %v1351
    %v1480 = vadd.f32 %v968, %v1352
    %v1481 = vadd.f32 %v969, %v1353
    %v1482 = vadd.f32 %v970, %v1354
    %v1483 = vadd.f32 %v971, %v1355
    %v1484 = vadd.f32 %v972, %v1356
    %v1485 = vadd.f32 %v973, %v1357
    %v1486 = vadd.f32 %v974, %v1358
    %v1487 = vadd.f32 %v975, %v1359
    %v1488 = vadd.f32 %v976, %v1360
    %v1489 = vadd.f32 %v977, %v1361
    %v1490 = vadd.f32 %v978, %v1362
    %v1491 = vadd.f32 %v979, %v1363
    %v1492 = vadd.f32 %v980, %v1364
    %v1493 = vadd.f32 %v981, %v1365
    %v1494 = vadd.f32 %v982, %v1366
    %v1495 = vadd.f32 %v983, %v1367
    %v1496 = vadd.f32 %v984, %v1368
    %v1497 = vadd.f32 %v985, %v1369
    %v1498 = vadd.f32 %v986, %v1370
    %v1499 = vadd.f32 %v987, %v1371
    %v1500 = vadd.f32 %v988, %v1372
    %v1501 = vadd.f32 %v989, %v1373
    %v1502 = vadd.f32 %v990, %v1374
    %v1503 = vadd.f32 %v991, %v1375
    %v1504 = vadd.f32 %v992, %v1376
    %v1505 = vadd.f32 %v993, %v1377
    %v1506 = vadd.f32 %v994, %v1378
    %v1507 = vadd.f32 %v995, %v1379
    %v1508 = vadd.f32 %v996, %v1380
    %v1509 = vadd.f32 %v997, %v1381
    %v1510 = vadd.f32 %v998, %v1382
    %v1511 = vadd.f32 %v999, %v1383
    %v1512 = vadd.f32 %v1000, %v1384
    %v1513 = vadd.f32 %v1001, %v1385
    %v1514 = vadd.f32 %v1002, %v1386
    %v1515 = vadd.f32 %v1003, %v1387
    %v1516 = vadd.f32 %v1004, %v1388
    %v1517 = vadd.f32 %v1005, %v1389
    %v1518 = vadd.f32 %v1006, %v1390
    %v1519 = vadd.f32 %v1007, %v1391
    %v1520 = vadd.f32 %v1008, %v1392
    %v1521 = vadd.f32 %v1009, %v1393
    %v1522 = vadd.f32 %v1010, %v1394
    %v1523 = vadd.f32 %v1011, %v1395
    %v1524 = vadd.f32 %v1012, %v1396
    %v1525 = vadd.f32 %v1013, %v1397
    %v1526 = vadd.f32 %v1014, %v1398
    %v1527 = vadd.f32 %v1015, %v1399
    %v1528 = vadd.f32 %v1016, %v1400
    %v1529 = vadd.f32 %v1017, %v1401
    %v1530 = vadd.f32 %v1018, %v1402
    %v1531 = vadd.f32 %v1019, %v1403
    %v1532 = vadd.f32 %v1020, %v1404
    %v1533 = vadd.f32 %v1021, %v1405
    %v1534 = vadd.f32 %v1022, %v1406
    %v1535 = vadd.f32 %v1023, %v1407
    %v1536 = vadd.f32 %v1024, %v1408
    %v1537 = vadd.f32 %v1025, %v1409
    %v1538 = vadd.f32 %v1026, %v1410
    %v1539 = vadd.f32 %v1027, %v1411
    %v1540 = vadd.f32 %v1028, %v1412
    %v1541 = vadd.f32 %v1029, %v1413
    %v1542 = vadd.f32 %v1030, %v1414
    %v1543 = vadd.f32 %v1031, %v1415
    %v1544 = vadd.f32 %v1032, %v1416
    %v1545 = vadd.f32 %v1033, %v1417
    %v1546 = vadd.f32 %v1034, %v1418
    %v1547 = vadd.f32 %v1035, %v1419
    %v1548 = vadd.f32 %v1036, %v1420
    %v1549 = vadd.f32 %v1037, %v1421
    %v1550 = vadd.f32 %v1038, %v1422
    %v1551 = vadd.f32 %v1039, %v1423
    %v1552 = vadd.f32 %v1040, %v1424
    %v1553 = vadd.f32 %v1041, %v1425
    %v1554 = vadd.f32 %v1042, %v1426
    %v1555 = vadd.f32 %v1043, %v1427
    %v1556 = vadd.f32 %v1044, %v1428
    %v1557 = vadd.f32 %v1045, %v1429
    %v1558 = vadd.f32 %v1046, %v1430
    %v1559 = vadd.f32 %v1047, %v1431
    %v1560 = vadd.f32 %v1048, %v1432
    %v1561 = vadd.f32 %v1049, %v1433
    %v1562 = vadd.f32 %v1050, %v1434
    %v1563 = vadd.f32 %v1051, %v1435
    %v1564 = vadd.f32 %v1052, %v1436
    %1565 = vadd.xlane.f32.xlu0 %v1437
    %v1566 = vpop.xlane.xlu0 %1565
    %1567 = vadd.xlane.f32.xlu0 %v1438
    %v1568 = vpop.xlane.xlu0 %1567
    %1569 = vadd.xlane.f32.xlu0 %v1439
    %v1570 = vpop.xlane.xlu0 %1569
    %1571 = vadd.xlane.f32.xlu0 %v1440
    %v1572 = vpop.xlane.xlu0 %1571
    %1573 = vadd.xlane.f32.xlu0 %v1441
    %v1574 = vpop.xlane.xlu0 %1573
    %1575 = vadd.xlane.f32.xlu0 %v1442
    %v1576 = vpop.xlane.xlu0 %1575
    %1577 = vadd.xlane.f32.xlu0 %v1443
    %v1578 = vpop.xlane.xlu0 %1577
    %1579 = vadd.xlane.f32.xlu0 %v1444
    %v1580 = vpop.xlane.xlu0 %1579
    %1581 = vadd.xlane.f32.xlu0 %v1445
    %v1582 = vpop.xlane.xlu0 %1581
    %1583 = vadd.xlane.f32.xlu0 %v1446
    %v1584 = vpop.xlane.xlu0 %1583
    %1585 = vadd.xlane.f32.xlu0 %v1447
    %v1586 = vpop.xlane.xlu0 %1585
    %1587 = vadd.xlane.f32.xlu0 %v1448
    %v1588 = vpop.xlane.xlu0 %1587
    %1589 = vadd.xlane.f32.xlu0 %v1449
    %v1590 = vpop.xlane.xlu0 %1589
    %1591 = vadd.xlane.f32.xlu0 %v1450
    %v1592 = vpop.xlane.xlu0 %1591
    %1593 = vadd.xlane.f32.xlu0 %v1451
    %v1594 = vpop.xlane.xlu0 %1593
    %1595 = vadd.xlane.f32.xlu0 %v1452
    %v1596 = vpop.xlane.xlu0 %1595
    %1597 = vadd.xlane.f32.xlu0 %v1453
    %v1598 = vpop.xlane.xlu0 %1597
    %1599 = vadd.xlane.f32.xlu0 %v1454
    %v1600 = vpop.xlane.xlu0 %1599
    %1601 = vadd.xlane.f32.xlu0 %v1455
    %v1602 = vpop.xlane.xlu0 %1601
    %1603 = vadd.xlane.f32.xlu0 %v1456
    %v1604 = vpop.xlane.xlu0 %1603
    %1605 = vadd.xlane.f32.xlu0 %v1457
    %v1606 = vpop.xlane.xlu0 %1605
    %1607 = vadd.xlane.f32.xlu0 %v1458
    %v1608 = vpop.xlane.xlu0 %1607
    %1609 = vadd.xlane.f32.xlu0 %v1459
    %v1610 = vpop.xlane.xlu0 %1609
    %1611 = vadd.xlane.f32.xlu0 %v1460
    %v1612 = vpop.xlane.xlu0 %1611
    %1613 = vadd.xlane.f32.xlu0 %v1461
    %v1614 = vpop.xlane.xlu0 %1613
    %1615 = vadd.xlane.f32.xlu0 %v1462
    %v1616 = vpop.xlane.xlu0 %1615
    %1617 = vadd.xlane.f32.xlu0 %v1463
    %v1618 = vpop.xlane.xlu0 %1617
    %1619 = vadd.xlane.f32.xlu0 %v1464
    %v1620 = vpop.xlane.xlu0 %1619
    %1621 = vadd.xlane.f32.xlu0 %v1465
    %v1622 = vpop.xlane.xlu0 %1621
    %1623 = vadd.xlane.f32.xlu0 %v1466
    %v1624 = vpop.xlane.xlu0 %1623
    %1625 = vadd.xlane.f32.xlu0 %v1467
    %v1626 = vpop.xlane.xlu0 %1625
    %1627 = vadd.xlane.f32.xlu0 %v1468
    %v1628 = vpop.xlane.xlu0 %1627
    %1629 = vadd.xlane.f32.xlu0 %v1469
    %v1630 = vpop.xlane.xlu0 %1629
    %1631 = vadd.xlane.f32.xlu0 %v1470
    %v1632 = vpop.xlane.xlu0 %1631
    %1633 = vadd.xlane.f32.xlu0 %v1471
    %v1634 = vpop.xlane.xlu0 %1633
    %1635 = vadd.xlane.f32.xlu0 %v1472
    %v1636 = vpop.xlane.xlu0 %1635
    %1637 = vadd.xlane.f32.xlu0 %v1473
    %v1638 = vpop.xlane.xlu0 %1637
    %1639 = vadd.xlane.f32.xlu0 %v1474
    %v1640 = vpop.xlane.xlu0 %1639
    %1641 = vadd.xlane.f32.xlu0 %v1475
    %v1642 = vpop.xlane.xlu0 %1641
    %1643 = vadd.xlane.f32.xlu0 %v1476
    %v1644 = vpop.xlane.xlu0 %1643
    %1645 = vadd.xlane.f32.xlu0 %v1477
    %v1646 = vpop.xlane.xlu0 %1645
    %1647 = vadd.xlane.f32.xlu0 %v1478
    %v1648 = vpop.xlane.xlu0 %1647
    %1649 = vadd.xlane.f32.xlu0 %v1479
    %v1650 = vpop.xlane.xlu0 %1649
    %1651 = vadd.xlane.f32.xlu0 %v1480
    %v1652 = vpop.xlane.xlu0 %1651
    %1653 = vadd.xlane.f32.xlu0 %v1481
    %v1654 = vpop.xlane.xlu0 %1653
    %1655 = vadd.xlane.f32.xlu0 %v1482
    %v1656 = vpop.xlane.xlu0 %1655
    %1657 = vadd.xlane.f32.xlu0 %v1483
    %v1658 = vpop.xlane.xlu0 %1657
    %1659 = vadd.xlane.f32.xlu0 %v1484
    %v1660 = vpop.xlane.xlu0 %1659
    %1661 = vadd.xlane.f32.xlu0 %v1485
    %v1662 = vpop.xlane.xlu0 %1661
    %1663 = vadd.xlane.f32.xlu0 %v1486
    %v1664 = vpop.xlane.xlu0 %1663
    %1665 = vadd.xlane.f32.xlu0 %v1487
    %v1666 = vpop.xlane.xlu0 %1665
    %1667 = vadd.xlane.f32.xlu0 %v1488
    %v1668 = vpop.xlane.xlu0 %1667
    %1669 = vadd.xlane.f32.xlu0 %v1489
    %v1670 = vpop.xlane.xlu0 %1669
    %1671 = vadd.xlane.f32.xlu0 %v1490
    %v1672 = vpop.xlane.xlu0 %1671
    %1673 = vadd.xlane.f32.xlu0 %v1491
    %v1674 = vpop.xlane.xlu0 %1673
    %1675 = vadd.xlane.f32.xlu0 %v1492
    %v1676 = vpop.xlane.xlu0 %1675
    %1677 = vadd.xlane.f32.xlu0 %v1493
    %v1678 = vpop.xlane.xlu0 %1677
    %1679 = vadd.xlane.f32.xlu0 %v1494
    %v1680 = vpop.xlane.xlu0 %1679
    %1681 = vadd.xlane.f32.xlu0 %v1495
    %v1682 = vpop.xlane.xlu0 %1681
    %1683 = vadd.xlane.f32.xlu0 %v1496
    %v1684 = vpop.xlane.xlu0 %1683
    %1685 = vadd.xlane.f32.xlu0 %v1497
    %v1686 = vpop.xlane.xlu0 %1685
    %1687 = vadd.xlane.f32.xlu0 %v1498
    %v1688 = vpop.xlane.xlu0 %1687
    %1689 = vadd.xlane.f32.xlu0 %v1499
    %v1690 = vpop.xlane.xlu0 %1689
    %1691 = vadd.xlane.f32.xlu0 %v1500
    %v1692 = vpop.xlane.xlu0 %1691
    %1693 = vadd.xlane.f32.xlu0 %v1501
    %v1694 = vpop.xlane.xlu0 %1693
    %1695 = vadd.xlane.f32.xlu0 %v1502
    %v1696 = vpop.xlane.xlu0 %1695
    %1697 = vadd.xlane.f32.xlu0 %v1503
    %v1698 = vpop.xlane.xlu0 %1697
    %1699 = vadd.xlane.f32.xlu0 %v1504
    %v1700 = vpop.xlane.xlu0 %1699
    %1701 = vadd.xlane.f32.xlu0 %v1505
    %v1702 = vpop.xlane.xlu0 %1701
    %1703 = vadd.xlane.f32.xlu0 %v1506
    %v1704 = vpop.xlane.xlu0 %1703
    %1705 = vadd.xlane.f32.xlu0 %v1507
    %v1706 = vpop.xlane.xlu0 %1705
    %1707 = vadd.xlane.f32.xlu0 %v1508
    %v1708 = vpop.xlane.xlu0 %1707
    %1709 = vadd.xlane.f32.xlu0 %v1509
    %v1710 = vpop.xlane.xlu0 %1709
    %1711 = vadd.xlane.f32.xlu0 %v1510
    %v1712 = vpop.xlane.xlu0 %1711
    %1713 = vadd.xlane.f32.xlu0 %v1511
    %v1714 = vpop.xlane.xlu0 %1713
    %1715 = vadd.xlane.f32.xlu0 %v1512
    %v1716 = vpop.xlane.xlu0 %1715
    %1717 = vadd.xlane.f32.xlu0 %v1513
    %v1718 = vpop.xlane.xlu0 %1717
    %1719 = vadd.xlane.f32.xlu0 %v1514
    %v1720 = vpop.xlane.xlu0 %1719
    %1721 = vadd.xlane.f32.xlu0 %v1515
    %v1722 = vpop.xlane.xlu0 %1721
    %1723 = vadd.xlane.f32.xlu0 %v1516
    %v1724 = vpop.xlane.xlu0 %1723
    %1725 = vadd.xlane.f32.xlu0 %v1517
    %v1726 = vpop.xlane.xlu0 %1725
    %1727 = vadd.xlane.f32.xlu0 %v1518
    %v1728 = vpop.xlane.xlu0 %1727
    %1729 = vadd.xlane.f32.xlu0 %v1519
    %v1730 = vpop.xlane.xlu0 %1729
    %1731 = vadd.xlane.f32.xlu0 %v1520
    %v1732 = vpop.xlane.xlu0 %1731
    %1733 = vadd.xlane.f32.xlu0 %v1521
    %v1734 = vpop.xlane.xlu0 %1733
    %1735 = vadd.xlane.f32.xlu0 %v1522
    %v1736 = vpop.xlane.xlu0 %1735
    %1737 = vadd.xlane.f32.xlu0 %v1523
    %v1738 = vpop.xlane.xlu0 %1737
    %1739 = vadd.xlane.f32.xlu0 %v1524
    %v1740 = vpop.xlane.xlu0 %1739
    %1741 = vadd.xlane.f32.xlu0 %v1525
    %v1742 = vpop.xlane.xlu0 %1741
    %1743 = vadd.xlane.f32.xlu0 %v1526
    %v1744 = vpop.xlane.xlu0 %1743
    %1745 = vadd.xlane.f32.xlu0 %v1527
    %v1746 = vpop.xlane.xlu0 %1745
    %1747 = vadd.xlane.f32.xlu0 %v1528
    %v1748 = vpop.xlane.xlu0 %1747
    %1749 = vadd.xlane.f32.xlu0 %v1529
    %v1750 = vpop.xlane.xlu0 %1749
    %1751 = vadd.xlane.f32.xlu0 %v1530
    %v1752 = vpop.xlane.xlu0 %1751
    %1753 = vadd.xlane.f32.xlu0 %v1531
    %v1754 = vpop.xlane.xlu0 %1753
    %1755 = vadd.xlane.f32.xlu0 %v1532
    %v1756 = vpop.xlane.xlu0 %1755
    %1757 = vadd.xlane.f32.xlu0 %v1533
    %v1758 = vpop.xlane.xlu0 %1757
    %1759 = vadd.xlane.f32.xlu0 %v1534
    %v1760 = vpop.xlane.xlu0 %1759
    %1761 = vadd.xlane.f32.xlu0 %v1535
    %v1762 = vpop.xlane.xlu0 %1761
    %1763 = vadd.xlane.f32.xlu0 %v1536
    %v1764 = vpop.xlane.xlu0 %1763
    %1765 = vadd.xlane.f32.xlu0 %v1537
    %v1766 = vpop.xlane.xlu0 %1765
    %1767 = vadd.xlane.f32.xlu0 %v1538
    %v1768 = vpop.xlane.xlu0 %1767
    %1769 = vadd.xlane.f32.xlu0 %v1539
    %v1770 = vpop.xlane.xlu0 %1769
    %1771 = vadd.xlane.f32.xlu0 %v1540
    %v1772 = vpop.xlane.xlu0 %1771
    %1773 = vadd.xlane.f32.xlu0 %v1541
    %v1774 = vpop.xlane.xlu0 %1773
    %1775 = vadd.xlane.f32.xlu0 %v1542
    %v1776 = vpop.xlane.xlu0 %1775
    %1777 = vadd.xlane.f32.xlu0 %v1543
    %v1778 = vpop.xlane.xlu0 %1777
    %1779 = vadd.xlane.f32.xlu0 %v1544
    %v1780 = vpop.xlane.xlu0 %1779
    %1781 = vadd.xlane.f32.xlu0 %v1545
    %v1782 = vpop.xlane.xlu0 %1781
    %1783 = vadd.xlane.f32.xlu0 %v1546
    %v1784 = vpop.xlane.xlu0 %1783
    %1785 = vadd.xlane.f32.xlu0 %v1547
    %v1786 = vpop.xlane.xlu0 %1785
    %1787 = vadd.xlane.f32.xlu0 %v1548
    %v1788 = vpop.xlane.xlu0 %1787
    %1789 = vadd.xlane.f32.xlu0 %v1549
    %v1790 = vpop.xlane.xlu0 %1789
    %1791 = vadd.xlane.f32.xlu0 %v1550
    %v1792 = vpop.xlane.xlu0 %1791
    %1793 = vadd.xlane.f32.xlu0 %v1551
    %v1794 = vpop.xlane.xlu0 %1793
    %1795 = vadd.xlane.f32.xlu0 %v1552
    %v1796 = vpop.xlane.xlu0 %1795
    %1797 = vadd.xlane.f32.xlu0 %v1553
    %v1798 = vpop.xlane.xlu0 %1797
    %1799 = vadd.xlane.f32.xlu0 %v1554
    %v1800 = vpop.xlane.xlu0 %1799
    %1801 = vadd.xlane.f32.xlu0 %v1555
    %v1802 = vpop.xlane.xlu0 %1801
    %1803 = vadd.xlane.f32.xlu0 %v1556
    %v1804 = vpop.xlane.xlu0 %1803
    %1805 = vadd.xlane.f32.xlu0 %v1557
    %v1806 = vpop.xlane.xlu0 %1805
    %1807 = vadd.xlane.f32.xlu0 %v1558
    %v1808 = vpop.xlane.xlu0 %1807
    %1809 = vadd.xlane.f32.xlu0 %v1559
    %v1810 = vpop.xlane.xlu0 %1809
    %1811 = vadd.xlane.f32.xlu0 %v1560
    %v1812 = vpop.xlane.xlu0 %1811
    %1813 = vadd.xlane.f32.xlu0 %v1561
    %v1814 = vpop.xlane.xlu0 %1813
    %1815 = vadd.xlane.f32.xlu0 %v1562
    %v1816 = vpop.xlane.xlu0 %1815
    %1817 = vadd.xlane.f32.xlu0 %v1563
    %v1818 = vpop.xlane.xlu0 %1817
    %1819 = vadd.xlane.f32.xlu0 %v1564
    %v1820 = vpop.xlane.xlu0 %1819
    %v1949 = vlaneseq
    %v1950 = vand.u32 %v1949, 127
    %v1951 = vlaneseq
    %v1952 = vshrl.u32 %v1951, 7
    %v1953 = vsub.s32 %v1950, %v1952
    %v1954 = vrot.slane %v1566, %v1953
    %v1955 = vadd.s32 %v1950, 4294967288
    %v1956 = vlaneseq
    %v1957 = vshrl.u32 %v1956, 7
    %v1958 = vsub.s32 %v1955, %v1957
    %v1959 = vrot.slane %v1568, %v1958
    %vm1960 = vcmask 130112
    %v1961 = vsel %vm1960, %v1959, %v1954
    %v1962 = vadd.s32 %v1950, 4294967280
    %v1963 = vlaneseq
    %v1964 = vshrl.u32 %v1963, 7
    %v1965 = vsub.s32 %v1962, %v1964
    %v1966 = vrot.slane %v1570, %v1965
    %vm1967 = vcmask 195712
    %v1968 = vsel %vm1967, %v1966, %v1961
    %v1969 = vadd.s32 %v1950, 4294967272
    %v1970 = vlaneseq
    %v1971 = vshrl.u32 %v1970, 7
    %v1972 = vsub.s32 %v1969, %v1971
    %v1973 = vrot.slane %v1572, %v1972
    %vm1974 = vcmask 261312
    %v1975 = vsel %vm1974, %v1973, %v1968
    %v1976 = vadd.s32 %v1950, 4294967264
    %v1977 = vlaneseq
    %v1978 = vshrl.u32 %v1977, 7
    %v1979 = vsub.s32 %v1976, %v1978
    %v1980 = vrot.slane %v1574, %v1979
    %vm1981 = vcmask 326912
    %v1982 = vsel %vm1981, %v1980, %v1975
    %v1983 = vadd.s32 %v1950, 4294967256
    %v1984 = vlaneseq
    %v1985 = vshrl.u32 %v1984, 7
    %v1986 = vsub.s32 %v1983, %v1985
    %v1987 = vrot.slane %v1576, %v1986
    %vm1988 = vcmask 392512
    %v1989 = vsel %vm1988, %v1987, %v1982
    %v1990 = vadd.s32 %v1950, 4294967248
    %v1991 = vlaneseq
    %v1992 = vshrl.u32 %v1991, 7
    %v1993 = vsub.s32 %v1990, %v1992
    %v1994 = vrot.slane %v1578, %v1993
    %vm1995 = vcmask 458112
    %v1996 = vsel %vm1995, %v1994, %v1989
    %v1997 = vadd.s32 %v1950, 4294967240
    %v1998 = vlaneseq
    %v1999 = vshrl.u32 %v1998, 7
    %v2000 = vsub.s32 %v1997, %v1999
    %v2001 = vrot.slane %v1580, %v2000
    %vm2002 = vcmask 523712
    %v2003 = vsel %vm2002, %v2001, %v1996
    %v2004 = vadd.s32 %v1950, 4294967232
    %v2005 = vlaneseq
    %v2006 = vshrl.u32 %v2005, 7
    %v2007 = vsub.s32 %v2004, %v2006
    %v2008 = vrot.slane %v1582, %v2007
    %vm2009 = vcmask 589312
    %v2010 = vsel %vm2009, %v2008, %v2003
    %v2011 = vadd.s32 %v1950, 4294967224
    %v2012 = vlaneseq
    %v2013 = vshrl.u32 %v2012, 7
    %v2014 = vsub.s32 %v2011, %v2013
    %v2015 = vrot.slane %v1584, %v2014
    %vm2016 = vcmask 654912
    %v2017 = vsel %vm2016, %v2015, %v2010
    %v2018 = vadd.s32 %v1950, 4294967216
    %v2019 = vlaneseq
    %v2020 = vshrl.u32 %v2019, 7
    %v2021 = vsub.s32 %v2018, %v2020
    %v2022 = vrot.slane %v1586, %v2021
    %vm2023 = vcmask 720512
    %v2024 = vsel %vm2023, %v2022, %v2017
    %v2025 = vadd.s32 %v1950, 4294967208
    %v2026 = vlaneseq
    %v2027 = vshrl.u32 %v2026, 7
    %v2028 = vsub.s32 %v2025, %v2027
    %v2029 = vrot.slane %v1588, %v2028
    %vm2030 = vcmask 786112
    %v2031 = vsel %vm2030, %v2029, %v2024
    %v2032 = vadd.s32 %v1950, 4294967200
    %v2033 = vlaneseq
    %v2034 = vshrl.u32 %v2033, 7
    %v2035 = vsub.s32 %v2032, %v2034
    %v2036 = vrot.slane %v1590, %v2035
    %vm2037 = vcmask 851712
    %v2038 = vsel %vm2037, %v2036, %v2031
    %v2039 = vadd.s32 %v1950, 4294967192
    %v2040 = vlaneseq
    %v2041 = vshrl.u32 %v2040, 7
    %v2042 = vsub.s32 %v2039, %v2041
    %v2043 = vrot.slane %v1592, %v2042
    %vm2044 = vcmask 917312
    %v2045 = vsel %vm2044, %v2043, %v2038
    %v2046 = vadd.s32 %v1950, 4294967184
    %v2047 = vlaneseq
    %v2048 = vshrl.u32 %v2047, 7
    %v2049 = vsub.s32 %v2046, %v2048
    %v2050 = vrot.slane %v1594, %v2049
    %vm2051 = vcmask 982912
    %v2052 = vsel %vm2051, %v2050, %v2045
    %v2053 = vadd.s32 %v1950, 4294967176
    %v2054 = vlaneseq
    %v2055 = vshrl.u32 %v2054, 7
    %v2056 = vsub.s32 %v2053, %v2055
    %v2057 = vrot.slane %v1596, %v2056
    %vm2058 = vcmask 1048512
    %v2059 = vsel %vm2058, %v2057, %v2052
    %v2060 = vlaneseq
    %v2061 = vshrl.u32 %v2060, 7
    %v2062 = vsub.s32 %v1950, %v2061
    %v2063 = vrot.slane %v1598, %v2062
    %v2064 = vlaneseq
    %v2065 = vshrl.u32 %v2064, 7
    %v2066 = vsub.s32 %v1955, %v2065
    %v2067 = vrot.slane %v1600, %v2066
    %v2068 = vsel %vm1960, %v2067, %v2063
    %v2069 = vlaneseq
    %v2070 = vshrl.u32 %v2069, 7
    %v2071 = vsub.s32 %v1962, %v2070
    %v2072 = vrot.slane %v1602, %v2071
    %v2073 = vsel %vm1967, %v2072, %v2068
    %v2074 = vlaneseq
    %v2075 = vshrl.u32 %v2074, 7
    %v2076 = vsub.s32 %v1969, %v2075
    %v2077 = vrot.slane %v1604, %v2076
    %v2078 = vsel %vm1974, %v2077, %v2073
    %v2079 = vlaneseq
    %v2080 = vshrl.u32 %v2079, 7
    %v2081 = vsub.s32 %v1976, %v2080
    %v2082 = vrot.slane %v1606, %v2081
    %v2083 = vsel %vm1981, %v2082, %v2078
    %v2084 = vlaneseq
    %v2085 = vshrl.u32 %v2084, 7
    %v2086 = vsub.s32 %v1983, %v2085
    %v2087 = vrot.slane %v1608, %v2086
    %v2088 = vsel %vm1988, %v2087, %v2083
    %v2089 = vlaneseq
    %v2090 = vshrl.u32 %v2089, 7
    %v2091 = vsub.s32 %v1990, %v2090
    %v2092 = vrot.slane %v1610, %v2091
    %v2093 = vsel %vm1995, %v2092, %v2088
    %v2094 = vlaneseq
    %v2095 = vshrl.u32 %v2094, 7
    %v2096 = vsub.s32 %v1997, %v2095
    %v2097 = vrot.slane %v1612, %v2096
    %v2098 = vsel %vm2002, %v2097, %v2093
    %v2099 = vlaneseq
    %v2100 = vshrl.u32 %v2099, 7
    %v2101 = vsub.s32 %v2004, %v2100
    %v2102 = vrot.slane %v1614, %v2101
    %v2103 = vsel %vm2009, %v2102, %v2098
    %v2104 = vlaneseq
    %v2105 = vshrl.u32 %v2104, 7
    %v2106 = vsub.s32 %v2011, %v2105
    %v2107 = vrot.slane %v1616, %v2106
    %v2108 = vsel %vm2016, %v2107, %v2103
    %v2109 = vlaneseq
    %v2110 = vshrl.u32 %v2109, 7
    %v2111 = vsub.s32 %v2018, %v2110
    %v2112 = vrot.slane %v1618, %v2111
    %v2113 = vsel %vm2023, %v2112, %v2108
    %v2114 = vlaneseq
    %v2115 = vshrl.u32 %v2114, 7
    %v2116 = vsub.s32 %v2025, %v2115
    %v2117 = vrot.slane %v1620, %v2116
    %v2118 = vsel %vm2030, %v2117, %v2113
    %v2119 = vlaneseq
    %v2120 = vshrl.u32 %v2119, 7
    %v2121 = vsub.s32 %v2032, %v2120
    %v2122 = vrot.slane %v1622, %v2121
    %v2123 = vsel %vm2037, %v2122, %v2118
    %v2124 = vlaneseq
    %v2125 = vshrl.u32 %v2124, 7
    %v2126 = vsub.s32 %v2039, %v2125
    %v2127 = vrot.slane %v1624, %v2126
    %v2128 = vsel %vm2044, %v2127, %v2123
    %v2129 = vlaneseq
    %v2130 = vshrl.u32 %v2129, 7
    %v2131 = vsub.s32 %v2046, %v2130
    %v2132 = vrot.slane %v1626, %v2131
    %v2133 = vsel %vm2051, %v2132, %v2128
    %v2134 = vlaneseq
    %v2135 = vshrl.u32 %v2134, 7
    %v2136 = vsub.s32 %v2053, %v2135
    %v2137 = vrot.slane %v1628, %v2136
    %v2138 = vsel %vm2058, %v2137, %v2133
    %v2139 = vlaneseq
    %v2140 = vshrl.u32 %v2139, 7
    %v2141 = vsub.s32 %v1950, %v2140
    %v2142 = vrot.slane %v1630, %v2141
    %v2143 = vlaneseq
    %v2144 = vshrl.u32 %v2143, 7
    %v2145 = vsub.s32 %v1955, %v2144
    %v2146 = vrot.slane %v1632, %v2145
    %v2147 = vsel %vm1960, %v2146, %v2142
    %v2148 = vlaneseq
    %v2149 = vshrl.u32 %v2148, 7
    %v2150 = vsub.s32 %v1962, %v2149
    %v2151 = vrot.slane %v1634, %v2150
    %v2152 = vsel %vm1967, %v2151, %v2147
    %v2153 = vlaneseq
    %v2154 = vshrl.u32 %v2153, 7
    %v2155 = vsub.s32 %v1969, %v2154
    %v2156 = vrot.slane %v1636, %v2155
    %v2157 = vsel %vm1974, %v2156, %v2152
    %v2158 = vlaneseq
    %v2159 = vshrl.u32 %v2158, 7
    %v2160 = vsub.s32 %v1976, %v2159
    %v2161 = vrot.slane %v1638, %v2160
    %v2162 = vsel %vm1981, %v2161, %v2157
    %v2163 = vlaneseq
    %v2164 = vshrl.u32 %v2163, 7
    %v2165 = vsub.s32 %v1983, %v2164
    %v2166 = vrot.slane %v1640, %v2165
    %v2167 = vsel %vm1988, %v2166, %v2162
    %v2168 = vlaneseq
    %v2169 = vshrl.u32 %v2168, 7
    %v2170 = vsub.s32 %v1990, %v2169
    %v2171 = vrot.slane %v1642, %v2170
    %v2172 = vsel %vm1995, %v2171, %v2167
    %v2173 = vlaneseq
    %v2174 = vshrl.u32 %v2173, 7
    %v2175 = vsub.s32 %v1997, %v2174
    %v2176 = vrot.slane %v1644, %v2175
    %v2177 = vsel %vm2002, %v2176, %v2172
    %v2178 = vlaneseq
    %v2179 = vshrl.u32 %v2178, 7
    %v2180 = vsub.s32 %v2004, %v2179
    %v2181 = vrot.slane %v1646, %v2180
    %v2182 = vsel %vm2009, %v2181, %v2177
    %v2183 = vlaneseq
    %v2184 = vshrl.u32 %v2183, 7
    %v2185 = vsub.s32 %v2011, %v2184
    %v2186 = vrot.slane %v1648, %v2185
    %v2187 = vsel %vm2016, %v2186, %v2182
    %v2188 = vlaneseq
    %v2189 = vshrl.u32 %v2188, 7
    %v2190 = vsub.s32 %v2018, %v2189
    %v2191 = vrot.slane %v1650, %v2190
    %v2192 = vsel %vm2023, %v2191, %v2187
    %v2193 = vlaneseq
    %v2194 = vshrl.u32 %v2193, 7
    %v2195 = vsub.s32 %v2025, %v2194
    %v2196 = vrot.slane %v1652, %v2195
    %v2197 = vsel %vm2030, %v2196, %v2192
    %v2198 = vlaneseq
    %v2199 = vshrl.u32 %v2198, 7
    %v2200 = vsub.s32 %v2032, %v2199
    %v2201 = vrot.slane %v1654, %v2200
    %v2202 = vsel %vm2037, %v2201, %v2197
    %v2203 = vlaneseq
    %v2204 = vshrl.u32 %v2203, 7
    %v2205 = vsub.s32 %v2039, %v2204
    %v2206 = vrot.slane %v1656, %v2205
    %v2207 = vsel %vm2044, %v2206, %v2202
    %v2208 = vlaneseq
    %v2209 = vshrl.u32 %v2208, 7
    %v2210 = vsub.s32 %v2046, %v2209
    %v2211 = vrot.slane %v1658, %v2210
    %v2212 = vsel %vm2051, %v2211, %v2207
    %v2213 = vlaneseq
    %v2214 = vshrl.u32 %v2213, 7
    %v2215 = vsub.s32 %v2053, %v2214
    %v2216 = vrot.slane %v1660, %v2215
    %v2217 = vsel %vm2058, %v2216, %v2212
    %v2218 = vlaneseq
    %v2219 = vshrl.u32 %v2218, 7
    %v2220 = vsub.s32 %v1950, %v2219
    %v2221 = vrot.slane %v1662, %v2220
    %v2222 = vlaneseq
    %v2223 = vshrl.u32 %v2222, 7
    %v2224 = vsub.s32 %v1955, %v2223
    %v2225 = vrot.slane %v1664, %v2224
    %v2226 = vsel %vm1960, %v2225, %v2221
    %v2227 = vlaneseq
    %v2228 = vshrl.u32 %v2227, 7
    %v2229 = vsub.s32 %v1962, %v2228
    %v2230 = vrot.slane %v1666, %v2229
    %v2231 = vsel %vm1967, %v2230, %v2226
    %v2232 = vlaneseq
    %v2233 = vshrl.u32 %v2232, 7
    %v2234 = vsub.s32 %v1969, %v2233
    %v2235 = vrot.slane %v1668, %v2234
    %v2236 = vsel %vm1974, %v2235, %v2231
    %v2237 = vlaneseq
    %v2238 = vshrl.u32 %v2237, 7
    %v2239 = vsub.s32 %v1976, %v2238
    %v2240 = vrot.slane %v1670, %v2239
    %v2241 = vsel %vm1981, %v2240, %v2236
    %v2242 = vlaneseq
    %v2243 = vshrl.u32 %v2242, 7
    %v2244 = vsub.s32 %v1983, %v2243
    %v2245 = vrot.slane %v1672, %v2244
    %v2246 = vsel %vm1988, %v2245, %v2241
    %v2247 = vlaneseq
    %v2248 = vshrl.u32 %v2247, 7
    %v2249 = vsub.s32 %v1990, %v2248
    %v2250 = vrot.slane %v1674, %v2249
    %v2251 = vsel %vm1995, %v2250, %v2246
    %v2252 = vlaneseq
    %v2253 = vshrl.u32 %v2252, 7
    %v2254 = vsub.s32 %v1997, %v2253
    %v2255 = vrot.slane %v1676, %v2254
    %v2256 = vsel %vm2002, %v2255, %v2251
    %v2257 = vlaneseq
    %v2258 = vshrl.u32 %v2257, 7
    %v2259 = vsub.s32 %v2004, %v2258
    %v2260 = vrot.slane %v1678, %v2259
    %v2261 = vsel %vm2009, %v2260, %v2256
    %v2262 = vlaneseq
    %v2263 = vshrl.u32 %v2262, 7
    %v2264 = vsub.s32 %v2011, %v2263
    %v2265 = vrot.slane %v1680, %v2264
    %v2266 = vsel %vm2016, %v2265, %v2261
    %v2267 = vlaneseq
    %v2268 = vshrl.u32 %v2267, 7
    %v2269 = vsub.s32 %v2018, %v2268
    %v2270 = vrot.slane %v1682, %v2269
    %v2271 = vsel %vm2023, %v2270, %v2266
    %v2272 = vlaneseq
    %v2273 = vshrl.u32 %v2272, 7
    %v2274 = vsub.s32 %v2025, %v2273
    %v2275 = vrot.slane %v1684, %v2274
    %v2276 = vsel %vm2030, %v2275, %v2271
    %v2277 = vlaneseq
    %v2278 = vshrl.u32 %v2277, 7
    %v2279 = vsub.s32 %v2032, %v2278
    %v2280 = vrot.slane %v1686, %v2279
    %v2281 = vsel %vm2037, %v2280, %v2276
    %v2282 = vlaneseq
    %v2283 = vshrl.u32 %v2282, 7
    %v2284 = vsub.s32 %v2039, %v2283
    %v2285 = vrot.slane %v1688, %v2284
    %v2286 = vsel %vm2044, %v2285, %v2281
    %v2287 = vlaneseq
    %v2288 = vshrl.u32 %v2287, 7
    %v2289 = vsub.s32 %v2046, %v2288
    %v2290 = vrot.slane %v1690, %v2289
    %v2291 = vsel %vm2051, %v2290, %v2286
    %v2292 = vlaneseq
    %v2293 = vshrl.u32 %v2292, 7
    %v2294 = vsub.s32 %v2053, %v2293
    %v2295 = vrot.slane %v1692, %v2294
    %v2296 = vsel %vm2058, %v2295, %v2291
    %v2297 = vlaneseq
    %v2298 = vshrl.u32 %v2297, 7
    %v2299 = vsub.s32 %v1950, %v2298
    %v2300 = vrot.slane %v1694, %v2299
    %v2301 = vlaneseq
    %v2302 = vshrl.u32 %v2301, 7
    %v2303 = vsub.s32 %v1955, %v2302
    %v2304 = vrot.slane %v1696, %v2303
    %v2305 = vsel %vm1960, %v2304, %v2300
    %v2306 = vlaneseq
    %v2307 = vshrl.u32 %v2306, 7
    %v2308 = vsub.s32 %v1962, %v2307
    %v2309 = vrot.slane %v1698, %v2308
    %v2310 = vsel %vm1967, %v2309, %v2305
    %v2311 = vlaneseq
    %v2312 = vshrl.u32 %v2311, 7
    %v2313 = vsub.s32 %v1969, %v2312
    %v2314 = vrot.slane %v1700, %v2313
    %v2315 = vsel %vm1974, %v2314, %v2310
    %v2316 = vlaneseq
    %v2317 = vshrl.u32 %v2316, 7
    %v2318 = vsub.s32 %v1976, %v2317
    %v2319 = vrot.slane %v1702, %v2318
    %v2320 = vsel %vm1981, %v2319, %v2315
    %v2321 = vlaneseq
    %v2322 = vshrl.u32 %v2321, 7
    %v2323 = vsub.s32 %v1983, %v2322
    %v2324 = vrot.slane %v1704, %v2323
    %v2325 = vsel %vm1988, %v2324, %v2320
    %v2326 = vlaneseq
    %v2327 = vshrl.u32 %v2326, 7
    %v2328 = vsub.s32 %v1990, %v2327
    %v2329 = vrot.slane %v1706, %v2328
    %v2330 = vsel %vm1995, %v2329, %v2325
    %v2331 = vlaneseq
    %v2332 = vshrl.u32 %v2331, 7
    %v2333 = vsub.s32 %v1997, %v2332
    %v2334 = vrot.slane %v1708, %v2333
    %v2335 = vsel %vm2002, %v2334, %v2330
    %v2336 = vlaneseq
    %v2337 = vshrl.u32 %v2336, 7
    %v2338 = vsub.s32 %v2004, %v2337
    %v2339 = vrot.slane %v1710, %v2338
    %v2340 = vsel %vm2009, %v2339, %v2335
    %v2341 = vlaneseq
    %v2342 = vshrl.u32 %v2341, 7
    %v2343 = vsub.s32 %v2011, %v2342
    %v2344 = vrot.slane %v1712, %v2343
    %v2345 = vsel %vm2016, %v2344, %v2340
    %v2346 = vlaneseq
    %v2347 = vshrl.u32 %v2346, 7
    %v2348 = vsub.s32 %v2018, %v2347
    %v2349 = vrot.slane %v1714, %v2348
    %v2350 = vsel %vm2023, %v2349, %v2345
    %v2351 = vlaneseq
    %v2352 = vshrl.u32 %v2351, 7
    %v2353 = vsub.s32 %v2025, %v2352
    %v2354 = vrot.slane %v1716, %v2353
    %v2355 = vsel %vm2030, %v2354, %v2350
    %v2356 = vlaneseq
    %v2357 = vshrl.u32 %v2356, 7
    %v2358 = vsub.s32 %v2032, %v2357
    %v2359 = vrot.slane %v1718, %v2358
    %v2360 = vsel %vm2037, %v2359, %v2355
    %v2361 = vlaneseq
    %v2362 = vshrl.u32 %v2361, 7
    %v2363 = vsub.s32 %v2039, %v2362
    %v2364 = vrot.slane %v1720, %v2363
    %v2365 = vsel %vm2044, %v2364, %v2360
    %v2366 = vlaneseq
    %v2367 = vshrl.u32 %v2366, 7
    %v2368 = vsub.s32 %v2046, %v2367
    %v2369 = vrot.slane %v1722, %v2368
    %v2370 = vsel %vm2051, %v2369, %v2365
    %v2371 = vlaneseq
    %v2372 = vshrl.u32 %v2371, 7
    %v2373 = vsub.s32 %v2053, %v2372
    %v2374 = vrot.slane %v1724, %v2373
    %v2375 = vsel %vm2058, %v2374, %v2370
    %v2376 = vlaneseq
    %v2377 = vshrl.u32 %v2376, 7
    %v2378 = vsub.s32 %v1950, %v2377
    %v2379 = vrot.slane %v1726, %v2378
    %v2380 = vlaneseq
    %v2381 = vshrl.u32 %v2380, 7
    %v2382 = vsub.s32 %v1955, %v2381
    %v2383 = vrot.slane %v1728, %v2382
    %v2384 = vsel %vm1960, %v2383, %v2379
    %v2385 = vlaneseq
    %v2386 = vshrl.u32 %v2385, 7
    %v2387 = vsub.s32 %v1962, %v2386
    %v2388 = vrot.slane %v1730, %v2387
    %v2389 = vsel %vm1967, %v2388, %v2384
    %v2390 = vlaneseq
    %v2391 = vshrl.u32 %v2390, 7
    %v2392 = vsub.s32 %v1969, %v2391
    %v2393 = vrot.slane %v1732, %v2392
    %v2394 = vsel %vm1974, %v2393, %v2389
    %v2395 = vlaneseq
    %v2396 = vshrl.u32 %v2395, 7
    %v2397 = vsub.s32 %v1976, %v2396
    %v2398 = vrot.slane %v1734, %v2397
    %v2399 = vsel %vm1981, %v2398, %v2394
    %v2400 = vlaneseq
    %v2401 = vshrl.u32 %v2400, 7
    %v2402 = vsub.s32 %v1983, %v2401
    %v2403 = vrot.slane %v1736, %v2402
    %v2404 = vsel %vm1988, %v2403, %v2399
    %v2405 = vlaneseq
    %v2406 = vshrl.u32 %v2405, 7
    %v2407 = vsub.s32 %v1990, %v2406
    %v2408 = vrot.slane %v1738, %v2407
    %v2409 = vsel %vm1995, %v2408, %v2404
    %v2410 = vlaneseq
    %v2411 = vshrl.u32 %v2410, 7
    %v2412 = vsub.s32 %v1997, %v2411
    %v2413 = vrot.slane %v1740, %v2412
    %v2414 = vsel %vm2002, %v2413, %v2409
    %v2415 = vlaneseq
    %v2416 = vshrl.u32 %v2415, 7
    %v2417 = vsub.s32 %v2004, %v2416
    %v2418 = vrot.slane %v1742, %v2417
    %v2419 = vsel %vm2009, %v2418, %v2414
    %v2420 = vlaneseq
    %v2421 = vshrl.u32 %v2420, 7
    %v2422 = vsub.s32 %v2011, %v2421
    %v2423 = vrot.slane %v1744, %v2422
    %v2424 = vsel %vm2016, %v2423, %v2419
    %v2425 = vlaneseq
    %v2426 = vshrl.u32 %v2425, 7
    %v2427 = vsub.s32 %v2018, %v2426
    %v2428 = vrot.slane %v1746, %v2427
    %v2429 = vsel %vm2023, %v2428, %v2424
    %v2430 = vlaneseq
    %v2431 = vshrl.u32 %v2430, 7
    %v2432 = vsub.s32 %v2025, %v2431
    %v2433 = vrot.slane %v1748, %v2432
    %v2434 = vsel %vm2030, %v2433, %v2429
    %v2435 = vlaneseq
    %v2436 = vshrl.u32 %v2435, 7
    %v2437 = vsub.s32 %v2032, %v2436
    %v2438 = vrot.slane %v1750, %v2437
    %v2439 = vsel %vm2037, %v2438, %v2434
    %v2440 = vlaneseq
    %v2441 = vshrl.u32 %v2440, 7
    %v2442 = vsub.s32 %v2039, %v2441
    %v2443 = vrot.slane %v1752, %v2442
    %v2444 = vsel %vm2044, %v2443, %v2439
    %v2445 = vlaneseq
    %v2446 = vshrl.u32 %v2445, 7
    %v2447 = vsub.s32 %v2046, %v2446
    %v2448 = vrot.slane %v1754, %v2447
    %v2449 = vsel %vm2051, %v2448, %v2444
    %v2450 = vlaneseq
    %v2451 = vshrl.u32 %v2450, 7
    %v2452 = vsub.s32 %v2053, %v2451
    %v2453 = vrot.slane %v1756, %v2452
    %v2454 = vsel %vm2058, %v2453, %v2449
    %v2455 = vlaneseq
    %v2456 = vshrl.u32 %v2455, 7
    %v2457 = vsub.s32 %v1950, %v2456
    %v2458 = vrot.slane %v1758, %v2457
    %v2459 = vlaneseq
    %v2460 = vshrl.u32 %v2459, 7
    %v2461 = vsub.s32 %v1955, %v2460
    %v2462 = vrot.slane %v1760, %v2461
    %v2463 = vsel %vm1960, %v2462, %v2458
    %v2464 = vlaneseq
    %v2465 = vshrl.u32 %v2464, 7
    %v2466 = vsub.s32 %v1962, %v2465
    %v2467 = vrot.slane %v1762, %v2466
    %v2468 = vsel %vm1967, %v2467, %v2463
    %v2469 = vlaneseq
    %v2470 = vshrl.u32 %v2469, 7
    %v2471 = vsub.s32 %v1969, %v2470
    %v2472 = vrot.slane %v1764, %v2471
    %v2473 = vsel %vm1974, %v2472, %v2468
    %v2474 = vlaneseq
    %v2475 = vshrl.u32 %v2474, 7
    %v2476 = vsub.s32 %v1976, %v2475
    %v2477 = vrot.slane %v1766, %v2476
    %v2478 = vsel %vm1981, %v2477, %v2473
    %v2479 = vlaneseq
    %v2480 = vshrl.u32 %v2479, 7
    %v2481 = vsub.s32 %v1983, %v2480
    %v2482 = vrot.slane %v1768, %v2481
    %v2483 = vsel %vm1988, %v2482, %v2478
    %v2484 = vlaneseq
    %v2485 = vshrl.u32 %v2484, 7
    %v2486 = vsub.s32 %v1990, %v2485
    %v2487 = vrot.slane %v1770, %v2486
    %v2488 = vsel %vm1995, %v2487, %v2483
    %v2489 = vlaneseq
    %v2490 = vshrl.u32 %v2489, 7
    %v2491 = vsub.s32 %v1997, %v2490
    %v2492 = vrot.slane %v1772, %v2491
    %v2493 = vsel %vm2002, %v2492, %v2488
    %v2494 = vlaneseq
    %v2495 = vshrl.u32 %v2494, 7
    %v2496 = vsub.s32 %v2004, %v2495
    %v2497 = vrot.slane %v1774, %v2496
    %v2498 = vsel %vm2009, %v2497, %v2493
    %v2499 = vlaneseq
    %v2500 = vshrl.u32 %v2499, 7
    %v2501 = vsub.s32 %v2011, %v2500
    %v2502 = vrot.slane %v1776, %v2501
    %v2503 = vsel %vm2016, %v2502, %v2498
    %v2504 = vlaneseq
    %v2505 = vshrl.u32 %v2504, 7
    %v2506 = vsub.s32 %v2018, %v2505
    %v2507 = vrot.slane %v1778, %v2506
    %v2508 = vsel %vm2023, %v2507, %v2503
    %v2509 = vlaneseq
    %v2510 = vshrl.u32 %v2509, 7
    %v2511 = vsub.s32 %v2025, %v2510
    %v2512 = vrot.slane %v1780, %v2511
    %v2513 = vsel %vm2030, %v2512, %v2508
    %v2514 = vlaneseq
    %v2515 = vshrl.u32 %v2514, 7
    %v2516 = vsub.s32 %v2032, %v2515
    %v2517 = vrot.slane %v1782, %v2516
    %v2518 = vsel %vm2037, %v2517, %v2513
    %v2519 = vlaneseq
    %v2520 = vshrl.u32 %v2519, 7
    %v2521 = vsub.s32 %v2039, %v2520
    %v2522 = vrot.slane %v1784, %v2521
    %v2523 = vsel %vm2044, %v2522, %v2518
    %v2524 = vlaneseq
    %v2525 = vshrl.u32 %v2524, 7
    %v2526 = vsub.s32 %v2046, %v2525
    %v2527 = vrot.slane %v1786, %v2526
    %v2528 = vsel %vm2051, %v2527, %v2523
    %v2529 = vlaneseq
    %v2530 = vshrl.u32 %v2529, 7
    %v2531 = vsub.s32 %v2053, %v2530
    %v2532 = vrot.slane %v1788, %v2531
    %v2533 = vsel %vm2058, %v2532, %v2528
    %v2534 = vlaneseq
    %v2535 = vshrl.u32 %v2534, 7
    %v2536 = vsub.s32 %v1950, %v2535
    %v2537 = vrot.slane %v1790, %v2536
    %v2538 = vlaneseq
    %v2539 = vshrl.u32 %v2538, 7
    %v2540 = vsub.s32 %v1955, %v2539
    %v2541 = vrot.slane %v1792, %v2540
    %v2542 = vsel %vm1960, %v2541, %v2537
    %v2543 = vlaneseq
    %v2544 = vshrl.u32 %v2543, 7
    %v2545 = vsub.s32 %v1962, %v2544
    %v2546 = vrot.slane %v1794, %v2545
    %v2547 = vsel %vm1967, %v2546, %v2542
    %v2548 = vlaneseq
    %v2549 = vshrl.u32 %v2548, 7
    %v2550 = vsub.s32 %v1969, %v2549
    %v2551 = vrot.slane %v1796, %v2550
    %v2552 = vsel %vm1974, %v2551, %v2547
    %v2553 = vlaneseq
    %v2554 = vshrl.u32 %v2553, 7
    %v2555 = vsub.s32 %v1976, %v2554
    %v2556 = vrot.slane %v1798, %v2555
    %v2557 = vsel %vm1981, %v2556, %v2552
    %v2558 = vlaneseq
    %v2559 = vshrl.u32 %v2558, 7
    %v2560 = vsub.s32 %v1983, %v2559
    %v2561 = vrot.slane %v1800, %v2560
    %v2562 = vsel %vm1988, %v2561, %v2557
    %v2563 = vlaneseq
    %v2564 = vshrl.u32 %v2563, 7
    %v2565 = vsub.s32 %v1990, %v2564
    %v2566 = vrot.slane %v1802, %v2565
    %v2567 = vsel %vm1995, %v2566, %v2562
    %v2568 = vlaneseq
    %v2569 = vshrl.u32 %v2568, 7
    %v2570 = vsub.s32 %v1997, %v2569
    %v2571 = vrot.slane %v1804, %v2570
    %v2572 = vsel %vm2002, %v2571, %v2567
    %v2573 = vlaneseq
    %v2574 = vshrl.u32 %v2573, 7
    %v2575 = vsub.s32 %v2004, %v2574
    %v2576 = vrot.slane %v1806, %v2575
    %v2577 = vsel %vm2009, %v2576, %v2572
    %v2578 = vlaneseq
    %v2579 = vshrl.u32 %v2578, 7
    %v2580 = vsub.s32 %v2011, %v2579
    %v2581 = vrot.slane %v1808, %v2580
    %v2582 = vsel %vm2016, %v2581, %v2577
    %v2583 = vlaneseq
    %v2584 = vshrl.u32 %v2583, 7
    %v2585 = vsub.s32 %v2018, %v2584
    %v2586 = vrot.slane %v1810, %v2585
    %v2587 = vsel %vm2023, %v2586, %v2582
    %v2588 = vlaneseq
    %v2589 = vshrl.u32 %v2588, 7
    %v2590 = vsub.s32 %v2025, %v2589
    %v2591 = vrot.slane %v1812, %v2590
    %v2592 = vsel %vm2030, %v2591, %v2587
    %v2593 = vlaneseq
    %v2594 = vshrl.u32 %v2593, 7
    %v2595 = vsub.s32 %v2032, %v2594
    %v2596 = vrot.slane %v1814, %v2595
    %v2597 = vsel %vm2037, %v2596, %v2592
    %v2598 = vlaneseq
    %v2599 = vshrl.u32 %v2598, 7
    %v2600 = vsub.s32 %v2039, %v2599
    %v2601 = vrot.slane %v1816, %v2600
    %v2602 = vsel %vm2044, %v2601, %v2597
    %v2603 = vlaneseq
    %v2604 = vshrl.u32 %v2603, 7
    %v2605 = vsub.s32 %v2046, %v2604
    %v2606 = vrot.slane %v1818, %v2605
    %v2607 = vsel %vm2051, %v2606, %v2602
    %v2608 = vlaneseq
    %v2609 = vshrl.u32 %v2608, 7
    %v2610 = vsub.s32 %v2053, %v2609
    %v2611 = vrot.slane %v1820, %v2610
    %v2612 = vsel %vm2058, %v2611, %v2607
    %vm2613 = vcmask 1041409
    %v2614 = vsel %vm2613, %v2138, %v2059
    %vm2615 = vcmask 1042434
    %v2616 = vsel %vm2615, %v2217, %v2614
    %vm2617 = vcmask 1043459
    %v2618 = vsel %vm2617, %v2296, %v2616
    %vm2619 = vcmask 1044484
    %v2620 = vsel %vm2619, %v2375, %v2618
    %vm2621 = vcmask 1045509
    %v2622 = vsel %vm2621, %v2454, %v2620
    %vm2623 = vcmask 1046534
    %v2624 = vsel %vm2623, %v2533, %v2622
    %vm2625 = vcmask 1047559
    %v2626 = vsel %vm2625, %v2612, %v2624
    %2628 = vadd.xlane.f32.xlu0 %v2626
    %v2629 = vpop.xlane.xlu0 %2628
    %v2630 = vmul.f32 %v2629, 0.5
    %v2631 = vld [vmem:[%s2] sm:$0xff]
    %v2632 = vadd.f32 %v2631, %v2630
    %vm2633 = vcmask 7168
    %2634 = vst.msk [vmem:[%s2] sm:$0xff] %vm2633, %v2632
    // Predicated region
    $region22: #{tpu_custom_call.1} parent=1 // pred_check
      _
    $region23: #{tpu_custom_call.1} parent=1 // pred_check_branch
      %2636 = sbr.rel (0) target = $region25
    $region24: #{tpu_custom_call.1} parent=1 // pred_region
      _
    $region25: #{tpu_custom_call.1} parent=1 // pred_fallthru
      _
    // Predicated region
    $region26: #{tpu_custom_call.1} parent=1 // pred_check
      _
    $region27: #{tpu_custom_call.1} parent=1 // pred_check_branch
      %2638 = sbr.rel (0) target = $region29
    $region28: #{tpu_custom_call.1} parent=1 // pred_region
      _
    $region29: #{tpu_custom_call.1} parent=1 // pred_fallthru
      _
    %2639 = vsyncpa [#allocation3], 1
    %2640 = vsyncpa [#allocation5], 1

</llo_original>
